<compile_context>
chip_gen: v6e
topology: v6e:2x2x1
jax: 0.10.0
libtpu: 0.0.40
codegen_flags: <defaults>
</compile_context>

<pallas_src>
from functools import partial

import jax
import jax.numpy as jnp
from jax.experimental import pallas as pl
from jax.experimental.pallas import tpu as pltpu

KW = 4            # conv kernel size
PADW = 1          # padding=1
EPS = 1e-5        # InstanceNorm2d default eps
SLOPE = 0.2       # LeakyReLU negative slope
LANE = 128
SUBLANE = 8
VMEM_LIMIT = 48 * 1024 * 1024   # safe on v5e/v6e (128 MiB) and v7x (64 MiB)


def _round_up(x, m):
    return (x + m - 1) // m * m


# ----------------------------------------------------------------------------
# Pallas kernel: tap-accumulated conv + bias (+ InstanceNorm) (+ LeakyReLU)
# ----------------------------------------------------------------------------
def _conv_kernel(x_ref, w_ref, b_ref, o_ref, *,
                 kh, kw, hout, wout, do_norm, do_leaky):
    # x_ref : (1, Hp, Wp, Cin)      bf16 padded activation, one batch element
    # w_ref : (kh*kw, Cin, CoutP)   bf16 per-tap weight slices
    # b_ref : (1, CoutP)            f32 bias (zero in padded channels)
    # o_ref : (1, P_pad, CoutP)     bf16 (intermediate) / f32 (final)
    p = hout * wout
    cout = w_ref.shape[-1]
    cin = x_ref.shape[-1]

    acc = jnp.zeros((p, cout), jnp.float32)
    for i in range(kh):                      # static tap loop (4 or 16 taps)
        for j in range(kw):
            tap = x_ref[0, pl.ds(i, hout), pl.ds(j, wout), :]   # (hout, wout, cin)
            tap = tap.reshape(p, cin)
            acc = acc + jnp.dot(tap, w_ref[i * kw + j],
                                preferred_element_type=jnp.float32)

    y = acc + b_ref[...]                                        # (p, cout) f32

    if do_norm:
        # InstanceNorm2d (affine=False, biased variance) over spatial axis.
        mean = jnp.mean(y, axis=0, keepdims=True)
        var = jnp.mean(jnp.square(y - mean), axis=0, keepdims=True)
        y = (y - mean) * jax.lax.rsqrt(var + EPS)

    if do_leaky:
        y = jnp.where(y > 0, y, SLOPE * y)

    o_ref[0, pl.ds(0, p), :] = y.astype(o_ref.dtype)
    p_pad = o_ref.shape[1]
    if p_pad > p:                            # static; zero the sublane padding
        o_ref[0, pl.ds(p, p_pad - p), :] = jnp.zeros((p_pad - p, cout),
                                                     o_ref.dtype)


# ----------------------------------------------------------------------------
# One discriminator layer
# ----------------------------------------------------------------------------
def conv_layer(x_nhwc, w, b, *, stride, do_norm, do_leaky, out_dtype):
    """x_nhwc: (N,H,W,Cin) ; w: (KW,KW,Cin,Cout) ; b: (Cout,)."""
    N, H, W, Cin = x_nhwc.shape
    Cout = w.shape[-1]
    Hout = (H + 2 * PADW - KW) // stride + 1
    Wout = (W + 2 * PADW - KW) // stride + 1

    xb = x_nhwc.astype(jnp.bfloat16)
    wb = w.astype(jnp.bfloat16)

    if stride == 2:
        # Pad (1,1) plus an extra zero row/col if needed so the padded extent
        # is even, then pixel-unshuffle by 2: the 4x4/stride-2 conv becomes a
        # 2x2/stride-1 conv over 4*Cin channels (4 contiguous taps).
        Hp, Wp = H + 2 * PADW, W + 2 * PADW
        eh, ew = Hp % 2, Wp % 2
        xp = jnp.pad(xb, ((0, 0), (PADW, PADW + eh), (PADW, PADW + ew), (0, 0)))
        Hp2, Wp2 = (Hp + eh) // 2, (Wp + ew) // 2
        xp = xp.reshape(N, Hp2, 2, Wp2, 2, Cin)
        xp = xp.transpose(0, 1, 3, 2, 4, 5).reshape(N, Hp2, Wp2, 4 * Cin)
        kh = kw = KW // 2
        # w[2p+di, 2q+dj, c, o] -> w_eff[p*2+q, (di*2+dj)*Cin + c, o]
        w_eff = wb.reshape(2, 2, 2, 2, Cin, Cout)            # (p, di, q, dj, c, o)
        w_eff = w_eff.transpose(0, 2, 1, 3, 4, 5).reshape(kh * kw, 4 * Cin, Cout)
    else:
        xp = jnp.pad(xb, ((0, 0), (PADW, PADW), (PADW, PADW), (0, 0)))
        kh = kw = KW
        w_eff = wb.reshape(kh * kw, Cin, Cout)

    cin_eff = w_eff.shape[1]
    cout_pad = _round_up(Cout, LANE)         # lane-dense output (Cout=1 -> 128)
    if cout_pad > Cout:
        w_eff = jnp.pad(w_eff, ((0, 0), (0, 0), (0, cout_pad - Cout)))
        b_eff = jnp.pad(b, (0, cout_pad - Cout))
    else:
        b_eff = b
    b_eff = b_eff.reshape(1, cout_pad).astype(jnp.float32)

    P = Hout * Wout
    P_pad = _round_up(P, SUBLANE)
    Hpk, Wpk = xp.shape[1], xp.shape[2]

    out = pl.pallas_call(
        partial(_conv_kernel, kh=kh, kw=kw, hout=Hout, wout=Wout,
                do_norm=do_norm, do_leaky=do_leaky),
        out_shape=jax.ShapeDtypeStruct((N, P_pad, cout_pad), out_dtype),
        grid=(N,),
        in_specs=[
            pl.BlockSpec((1, Hpk, Wpk, cin_eff), lambda n: (n, 0, 0, 0)),
            pl.BlockSpec((kh * kw, cin_eff, cout_pad), lambda n: (0, 0, 0)),
            pl.BlockSpec((1, cout_pad), lambda n: (0, 0)),
        ],
        out_specs=pl.BlockSpec((1, P_pad, cout_pad), lambda n: (n, 0, 0)),
        compiler_params=pltpu.CompilerParams(
            dimension_semantics=("parallel",),
            vmem_limit_bytes=VMEM_LIMIT),
    )(xp, w_eff, b_eff)

    # strip sublane / lane padding and restore spatial shape
    return out[:, :P, :Cout].reshape(N, Hout, Wout, Cout)


# ----------------------------------------------------------------------------
# Parameter construction (mirrors NLayerDiscriminator.__init__, use_sigmoid=False)
# ----------------------------------------------------------------------------
def build_layer_specs(input_nc, ndf=64, n_layers=3):
    # each spec: (cin, cout, stride, do_norm, do_leaky)
    specs = [(input_nc, ndf, 2, False, True)]
    nf_mult = 1
    for n in range(1, n_layers):
        nf_mult_prev, nf_mult = nf_mult, min(2 ** n, 8)
        specs.append((ndf * nf_mult_prev, ndf * nf_mult, 2, True, True))
    nf_mult_prev, nf_mult = nf_mult, min(2 ** n_layers, 8)
    specs.append((ndf * nf_mult_prev, ndf * nf_mult, 1, True, True))
    specs.append((ndf * nf_mult, 1, 1, False, False))
    return specs


def init_params(key, specs):
    params = []
    for (cin, cout, stride, norm, leaky) in specs:
        key, k1, k2 = jax.random.split(key, 3)
        w = 0.02 * jax.random.normal(k1, (KW, KW, cin, cout), jnp.float32)
        b = 0.02 * jax.random.normal(k2, (cout,), jnp.float32)
        params.append(dict(w=w, b=b, stride=stride, norm=norm, leaky=leaky))
    return params


def discriminator_forward(x_nchw, params):
    y = jnp.transpose(x_nchw, (0, 2, 3, 1))                     # NCHW -> NHWC
    for li, p in enumerate(params):
        last = li == len(params) - 1
        y = conv_layer(y, p["w"], p["b"], stride=p["stride"],
                       do_norm=p["norm"], do_leaky=p["leaky"],
                       out_dtype=jnp.float32 if last else jnp.bfloat16)
    return jnp.transpose(y, (0, 3, 1, 2))                       # NHWC -> NCHW


# ----------------------------------------------------------------------------
# Pure-JAX reference with identical bf16 input/activation quantization
# ----------------------------------------------------------------------------
def reference_forward(x_nchw, params):
    y = jnp.transpose(x_nchw, (0, 2, 3, 1))
    for li, p in enumerate(params):
        last = li == len(params) - 1
        out = jax.lax.conv_general_dilated(
            y.astype(jnp.bfloat16), p["w"].astype(jnp.bfloat16),
            (p["stride"], p["stride"]), [(PADW, PADW), (PADW, PADW)],
            dimension_numbers=("NHWC", "HWIO", "NHWC"),
            preferred_element_type=jnp.float32)
        out = out + p["b"].reshape(1, 1, 1, -1)
        if p["norm"]:
            m = jnp.mean(out, axis=(1, 2), keepdims=True)
            v = jnp.mean(jnp.square(out - m), axis=(1, 2), keepdims=True)
            out = (out - m) * jax.lax.rsqrt(v + EPS)
        if p["leaky"]:
            out = jnp.where(out > 0, out, SLOPE * out)
        y = out if last else out.astype(jnp.bfloat16)
    return jnp.transpose(y, (0, 3, 1, 2)).astype(jnp.float32)


if __name__ == "__main__":
    key = jax.random.PRNGKey(0)
    kx, kp = jax.random.split(key)

    # batch=2, input_nc=4, spatial=32 (32 is the smallest nice size for which a
    # 3-downsample PatchGAN produces a non-empty output map: here 2x2).
    N, C, H, W = 2, 4, 32, 32
    x = jax.random.normal(kx, (N, C, H, W), jnp.float32)        # NCHW like PyTorch

    specs = build_layer_specs(input_nc=C, ndf=8, n_layers=3)
    params = init_params(kp, specs)

    out = jax.block_until_ready(discriminator_forward(x, params))
    ref = jax.block_until_ready(reference_forward(x, params))

    assert out.shape == ref.shape == (N, 1, 2, 2), (out.shape, ref.shape)
    assert jnp.allclose(out, ref, rtol=1e-2, atol=1e-2), \
        f"mismatch vs JAX reference: max abs err {float(jnp.max(jnp.abs(out - ref)))}"

    print("KERNEL_OK")
</pallas_src>

<mosaic_0001>
module attributes {stable_mosaic.version = 11 : i64} {
  func.func @_conv_kernel(%arg0: i32, %arg1: memref<1x17x17x16xbf16, #tpu.memory_space<vmem>>, %arg2: memref<4x16x128xbf16, #tpu.memory_space<vmem>>, %arg3: memref<1x128xf32, #tpu.memory_space<vmem>>, %arg4: memref<1x256x128xbf16, #tpu.memory_space<vmem>>) attributes {dimension_semantics = [#tpu.dimension_semantics<parallel>], iteration_bounds = array<i64: 2>, scalar_prefetch = 0 : i64, scratch_operands = 0 : i64, tpu.core_type = #tpu.core_type<tc>, window_params = [{transform_indices = @transform_0, window_bounds = array<i64: 1, 17, 17, 16>}, {pipeline_mode = #tpu.pipeline_mode<synchronous>, transform_indices = @transform_1, window_bounds = array<i64: 4, 16, 128>}, {pipeline_mode = #tpu.pipeline_mode<synchronous>, transform_indices = @transform_2, window_bounds = array<i64: 1, 128>}, {transform_indices = @transform_3, window_bounds = array<i64: 1, 256, 128>}]} {
    %cst = arith.constant 0.000000e+00 : f32
    %0 = vector.broadcast %cst : f32 to vector<256x128xf32>
    %c0 = arith.constant 0 : index
    %c0_0 = arith.constant 0 : index
    %c0_1 = arith.constant 0 : index
    %c0_2 = arith.constant 0 : index
    %1 = vector.load %arg1[%c0, %c0_0, %c0_1, %c0_2] : memref<1x17x17x16xbf16, #tpu.memory_space<vmem>>, vector<1x16x16x16xbf16>
    %2 = vector.shape_cast %1 : vector<1x16x16x16xbf16> to vector<16x16x16xbf16>
    %3 = vector.shape_cast %2 : vector<16x16x16xbf16> to vector<256x16xbf16>
    %c0_3 = arith.constant 0 : index
    %c0_4 = arith.constant 0 : index
    %c0_5 = arith.constant 0 : index
    %4 = vector.load %arg2[%c0_3, %c0_4, %c0_5] : memref<4x16x128xbf16, #tpu.memory_space<vmem>>, vector<1x16x128xbf16>
    %5 = vector.shape_cast %4 : vector<1x16x128xbf16> to vector<16x128xbf16>
    %cst_6 = arith.constant dense<0.000000e+00> : vector<256x128xf32>
    %6 = tpu.matmul %3, %5, %cst_6 {dimension_numbers = #tpu.dot_dimension_numbers<[1], [0], [0], [1], [0, 0, 1, 1], [], []>} : vector<256x16xbf16>, vector<16x128xbf16>, vector<256x128xf32> -> vector<256x128xf32>
    %7 = arith.addf %0, %6 : vector<256x128xf32>
    %c0_7 = arith.constant 0 : index
    %c0_8 = arith.constant 0 : index
    %c1 = arith.constant 1 : index
    %c0_9 = arith.constant 0 : index
    %8 = vector.load %arg1[%c0_7, %c0_8, %c1, %c0_9] : memref<1x17x17x16xbf16, #tpu.memory_space<vmem>>, vector<1x16x16x16xbf16>
    %9 = vector.shape_cast %8 : vector<1x16x16x16xbf16> to vector<16x16x16xbf16>
    %10 = vector.shape_cast %9 : vector<16x16x16xbf16> to vector<256x16xbf16>
    %c1_10 = arith.constant 1 : index
    %c0_11 = arith.constant 0 : index
    %c0_12 = arith.constant 0 : index
    %11 = vector.load %arg2[%c1_10, %c0_11, %c0_12] : memref<4x16x128xbf16, #tpu.memory_space<vmem>>, vector<1x16x128xbf16>
    %12 = vector.shape_cast %11 : vector<1x16x128xbf16> to vector<16x128xbf16>
    %cst_13 = arith.constant dense<0.000000e+00> : vector<256x128xf32>
    %13 = tpu.matmul %10, %12, %cst_13 {dimension_numbers = #tpu.dot_dimension_numbers<[1], [0], [0], [1], [0, 0, 1, 1], [], []>} : vector<256x16xbf16>, vector<16x128xbf16>, vector<256x128xf32> -> vector<256x128xf32>
    %14 = arith.addf %7, %13 : vector<256x128xf32>
    %c0_14 = arith.constant 0 : index
    %c1_15 = arith.constant 1 : index
    %c0_16 = arith.constant 0 : index
    %c0_17 = arith.constant 0 : index
    %15 = vector.load %arg1[%c0_14, %c1_15, %c0_16, %c0_17] : memref<1x17x17x16xbf16, #tpu.memory_space<vmem>>, vector<1x16x16x16xbf16>
    %16 = vector.shape_cast %15 : vector<1x16x16x16xbf16> to vector<16x16x16xbf16>
    %17 = vector.shape_cast %16 : vector<16x16x16xbf16> to vector<256x16xbf16>
    %c2 = arith.constant 2 : index
    %c0_18 = arith.constant 0 : index
    %c0_19 = arith.constant 0 : index
    %18 = vector.load %arg2[%c2, %c0_18, %c0_19] : memref<4x16x128xbf16, #tpu.memory_space<vmem>>, vector<1x16x128xbf16>
    %19 = vector.shape_cast %18 : vector<1x16x128xbf16> to vector<16x128xbf16>
    %cst_20 = arith.constant dense<0.000000e+00> : vector<256x128xf32>
    %20 = tpu.matmul %17, %19, %cst_20 {dimension_numbers = #tpu.dot_dimension_numbers<[1], [0], [0], [1], [0, 0, 1, 1], [], []>} : vector<256x16xbf16>, vector<16x128xbf16>, vector<256x128xf32> -> vector<256x128xf32>
    %21 = arith.addf %14, %20 : vector<256x128xf32>
    %c0_21 = arith.constant 0 : index
    %c1_22 = arith.constant 1 : index
    %c1_23 = arith.constant 1 : index
    %c0_24 = arith.constant 0 : index
    %22 = vector.load %arg1[%c0_21, %c1_22, %c1_23, %c0_24] : memref<1x17x17x16xbf16, #tpu.memory_space<vmem>>, vector<1x16x16x16xbf16>
    %23 = vector.shape_cast %22 : vector<1x16x16x16xbf16> to vector<16x16x16xbf16>
    %24 = vector.shape_cast %23 : vector<16x16x16xbf16> to vector<256x16xbf16>
    %c3 = arith.constant 3 : index
    %c0_25 = arith.constant 0 : index
    %c0_26 = arith.constant 0 : index
    %25 = vector.load %arg2[%c3, %c0_25, %c0_26] : memref<4x16x128xbf16, #tpu.memory_space<vmem>>, vector<1x16x128xbf16>
    %26 = vector.shape_cast %25 : vector<1x16x128xbf16> to vector<16x128xbf16>
    %cst_27 = arith.constant dense<0.000000e+00> : vector<256x128xf32>
    %27 = tpu.matmul %24, %26, %cst_27 {dimension_numbers = #tpu.dot_dimension_numbers<[1], [0], [0], [1], [0, 0, 1, 1], [], []>} : vector<256x16xbf16>, vector<16x128xbf16>, vector<256x128xf32> -> vector<256x128xf32>
    %28 = arith.addf %21, %27 : vector<256x128xf32>
    %c0_28 = arith.constant 0 : index
    %c0_29 = arith.constant 0 : index
    %29 = vector.load %arg3[%c0_28, %c0_29] : memref<1x128xf32, #tpu.memory_space<vmem>>, vector<1x128xf32>
    %30 = vector.broadcast %29 : vector<1x128xf32> to vector<256x128xf32>
    %31 = arith.addf %28, %30 : vector<256x128xf32>
    %cst_30 = arith.constant 0.000000e+00 : f32
    %32 = vector.broadcast %cst_30 : f32 to vector<256x128xf32>
    %33 = arith.cmpf ogt, %31, %32 : vector<256x128xf32>
    %cst_31 = arith.constant 2.000000e-01 : f32
    %34 = vector.broadcast %cst_31 : f32 to vector<256x128xf32>
    %35 = arith.mulf %34, %31 : vector<256x128xf32>
    %36 = arith.select %33, %31, %35 : vector<256x128xi1>, vector<256x128xf32>
    %37 = arith.truncf %36 : vector<256x128xf32> to vector<256x128xbf16>
    %c0_32 = arith.constant 0 : index
    %c0_33 = arith.constant 0 : index
    %c0_34 = arith.constant 0 : index
    %38 = vector.load %arg4[%c0_32, %c0_33, %c0_34] : memref<1x256x128xbf16, #tpu.memory_space<vmem>>, vector<1x256x128xbf16>
    %39 = vector.shape_cast %38 : vector<1x256x128xbf16> to vector<256x128xbf16>
    %40 = vector.shape_cast %37 : vector<256x128xbf16> to vector<1x256x128xbf16>
    tpu.vector_store %arg4[%c0_32, %c0_33, %c0_34], %40 {strides = array<i32>} : memref<1x256x128xbf16, #tpu.memory_space<vmem>>, vector<1x256x128xbf16>,
    return
  }
  func.func @transform_0(%arg0: i32) -> (i32, i32, i32, i32) {
    %c0_i32 = arith.constant 0 : i32
    %c0_i32_0 = arith.constant 0 : i32
    %c0_i32_1 = arith.constant 0 : i32
    %c0_i32_2 = arith.constant 0 : i32
    return %arg0, %c0_i32, %c0_i32_0, %c0_i32_1 : i32, i32, i32, i32
  }
  func.func @transform_1(%arg0: i32) -> (i32, i32, i32) {
    %c0_i32 = arith.constant 0 : i32
    %c0_i32_0 = arith.constant 0 : i32
    %c0_i32_1 = arith.constant 0 : i32
    %c0_i32_2 = arith.constant 0 : i32
    return %c0_i32, %c0_i32_0, %c0_i32_1 : i32, i32, i32
  }
  func.func @transform_2(%arg0: i32) -> (i32, i32) {
    %c0_i32 = arith.constant 0 : i32
    %c0_i32_0 = arith.constant 0 : i32
    %c0_i32_1 = arith.constant 0 : i32
    return %c0_i32, %c0_i32_0 : i32, i32
  }
  func.func @transform_3(%arg0: i32) -> (i32, i32, i32) {
    %c0_i32 = arith.constant 0 : i32
    %c0_i32_0 = arith.constant 0 : i32
    %c0_i32_1 = arith.constant 0 : i32
    return %arg0, %c0_i32, %c0_i32_0 : i32, i32, i32
  }
}

</mosaic_0001>

<llo_original>
// kernel: tpu_custom_call.1
$region0: #{tpu_custom_call.1}
  #allocation0 [shape = 'u32[]', space=smem, size = 0x4, offset = 0x4, fixed_abs, tag = 'smem constant byte address 0x4 - core index']
  #allocation1 [shape = 'u32[144,128]{1,0:T(1,128)}', space=vmem, size = 0x12000, scoped, tag = 'internal scratch']
  %s0 = inlined_call_operand.vmem [shape: bf16[2,17,17,16], index: 0, kind: input, shape index: {}]
  %s1 = inlined_call_operand.vmem [shape: bf16[4,16,128], index: 1, kind: input, shape index: {}]
  %s2 = inlined_call_operand.vmem [shape: f32[1,128], index: 2, kind: input, shape index: {}]
  %s3 = inlined_call_operand.hbm [shape: bf16[2,256,128], index: 3, kind: output, shape index: {}]
  %s4 = sld [smem:[#allocation0]]
  $region45: #{tpu_custom_call.1} parent=0
    _
  %s6 = ssub.s32 1, %s4
  %s7 = scalar_select 0, %s6, %s4
  $region1: #{tpu_custom_call.1} parent=0
    #allocation2 [shape = 'u8[131072]{0}', space=vmem, size = 0x20000, scoped, tag = 'output window, operand 0']
    #allocation3 [shape = 's32[2]{0}', space=sflag, size = 0x8, scoped, tag = 'scoped memory for tpu_custom_call.1']
    %8 = vsyncpa [#allocation3], 0
    %s9 = scalar_lea.sflag [#allocation3], 1
    %10 = vsyncpa %s9, 0
    loop: start=0, step=1, limit=4
    $region2: #{tpu_custom_call.1} parent=1 // loop_pre_header
      _
    $region3: #{tpu_custom_call.1} parent=1 // loop_header
      %s12 = sphi 0, %s16
      %p13 = scmp.ge.s32.totalorder %s12, 4
      %s22 = sphi 0, %s24
      %s25 = sphi 0, %s22
      %s26 = sphi 0, %s25
      %s42 = sphi 0, %s26
      %s46 = sphi 0, %s46
      %s48 = sphi 0, %s46
      %s49 = sphi 0, %s48
      %s63 = sphi 0, %s49
      %s67 = sphi 0, %s67
      %s69 = sphi 0, %s67
      %s70 = sphi 0, %s69
      %s84 = sphi 0, %s70
      %s90 = sphi 0, %s92
      %s93 = sphi 0, %s90
      %s94 = sphi 0, %s93
      %s110 = sphi 0, %s94
    $region4: #{tpu_custom_call.1} parent=1 // loop_header_branch
      %15 = sbr.rel (%p13) target = $region8
    $region5: #{tpu_custom_call.1} parent=1 // loop_body
      %s17 = ssub.s32 %s12, 1
      %s18 = ssub.s32 %s12, 2
      %s19 = sadd.s32 %s12, 1
      %s20 = ssub.s32 %s12, %s19
      %p21 = scmp.eq.s32.totalorder %s20, 0
      %s23 = sadd.s32 %s22, 1
      %s24 = scalar_select %p21, %s22, %s23
      %p27 = pneg %p21
      %p28 = scmp.eq.s32.totalorder %s12, 1
      %p29 = por %p27, %p28
      %p30 = scmp.ne.s32.totalorder %s22, %s25
      %p31 = scmp.eq.s32.totalorder %s12, 0
      %p32 = por %p30, %p31
      %p33 = scmp.ne.s32.totalorder %s22, %s25
      %p34 = scmp.eq.s32.totalorder %s17, 1
      %p35 = por %p33, %p34
      %p36 = scmp.ne.s32.totalorder %s25, %s26
      %p37 = scmp.eq.s32.totalorder %s17, 0
      %p38 = por %p36, %p37
      %p39 = scmp.ne.s32.totalorder %s25, %s26
      %p40 = scmp.eq.s32.totalorder %s18, 1
      %p41 = por %p39, %p40
      %p43 = scmp.ne.s32.totalorder %s26, %s42
      %p44 = scmp.eq.s32.totalorder %s18, 0
      %p45 = por %p43, %p44
      %s47 = sadd.s32 %s46, 1
      %p50 = scmp.eq.s32.totalorder %s12, 1
      %p51 = scmp.ne.s32.totalorder %s46, %s48
      %p52 = scmp.eq.s32.totalorder %s12, 0
      %p53 = por %p51, %p52
      %p54 = scmp.ne.s32.totalorder %s46, %s48
      %p55 = scmp.eq.s32.totalorder %s17, 1
      %p56 = por %p54, %p55
      %p57 = scmp.ne.s32.totalorder %s48, %s49
      %p58 = scmp.eq.s32.totalorder %s17, 0
      %p59 = por %p57, %p58
      %p60 = scmp.ne.s32.totalorder %s48, %s49
      %p61 = scmp.eq.s32.totalorder %s18, 1
      %p62 = por %p60, %p61
      %p64 = scmp.ne.s32.totalorder %s49, %s63
      %p65 = scmp.eq.s32.totalorder %s18, 0
      %p66 = por %p64, %p65
      %s68 = sadd.s32 %s67, 1
      %p71 = scmp.eq.s32.totalorder %s12, 1
      %p72 = scmp.ne.s32.totalorder %s67, %s69
      %p73 = scmp.eq.s32.totalorder %s12, 0
      %p74 = por %p72, %p73
      %p75 = scmp.ne.s32.totalorder %s67, %s69
      %p76 = scmp.eq.s32.totalorder %s17, 1
      %p77 = por %p75, %p76
      %p78 = scmp.ne.s32.totalorder %s69, %s70
      %p79 = scmp.eq.s32.totalorder %s17, 0
      %p80 = por %p78, %p79
      %p81 = scmp.ne.s32.totalorder %s69, %s70
      %p82 = scmp.eq.s32.totalorder %s18, 1
      %p83 = por %p81, %p82
      %p85 = scmp.ne.s32.totalorder %s70, %s84
      %p86 = scmp.eq.s32.totalorder %s18, 0
      %p87 = por %p85, %p86
      %s88 = ssub.s32 %s12, %s19
      %p89 = scmp.eq.s32.totalorder %s88, 0
      %s91 = sadd.s32 %s90, 1
      %s92 = scalar_select %p89, %s90, %s91
      %p95 = pneg %p89
      %p96 = scmp.eq.s32.totalorder %s12, 1
      %p97 = por %p95, %p96
      %p98 = scmp.ne.s32.totalorder %s90, %s93
      %p99 = scmp.eq.s32.totalorder %s12, 0
      %p100 = por %p98, %p99
      %p101 = scmp.ne.s32.totalorder %s90, %s93
      %p102 = scmp.eq.s32.totalorder %s17, 1
      %p103 = por %p101, %p102
      %p104 = scmp.ne.s32.totalorder %s93, %s94
      %p105 = scmp.eq.s32.totalorder %s17, 0
      %p106 = por %p104, %p105
      %p107 = scmp.ne.s32.totalorder %s93, %s94
      %p108 = scmp.eq.s32.totalorder %s18, 1
      %p109 = por %p107, %p108
      %p111 = scmp.ne.s32.totalorder %s94, %s110
      %p112 = scmp.eq.s32.totalorder %s18, 0
      %p113 = por %p111, %p112
      %p114 = scmp.le.s32.totalorder 1, %s12
      %p115 = scmp.lt.s32.totalorder %s12, 3
      %p116 = pnand %p114, %p115
      %p117 = pneg %p116
      // Predicated region
      $region9: #{tpu_custom_call.1} parent=5 // pred_check
        _
      $region10: #{tpu_custom_call.1} parent=5 // pred_check_branch
        %119 = sbr.rel (%p116) target = $region12
      $region11: #{tpu_custom_call.1} parent=5 // pred_region
        %s120 = ssub.s32 %s12, 1
        // Predicated region
        $region13: #{tpu_custom_call.1} parent=11 // pred_check
          %p121 = pneg %p59
        $region14: #{tpu_custom_call.1} parent=11 // pred_check_branch
          %123 = sbr.rel (%p121) target = $region16
        $region15: #{tpu_custom_call.1} parent=11 // pred_region
          _
        $region16: #{tpu_custom_call.1} parent=11 // pred_fallthru
          _
        // Predicated region
        $region17: #{tpu_custom_call.1} parent=11 // pred_check
          %p124 = pneg %p80
        $region18: #{tpu_custom_call.1} parent=11 // pred_check_branch
          %126 = sbr.rel (%p124) target = $region20
        $region19: #{tpu_custom_call.1} parent=11 // pred_region
          _
        $region20: #{tpu_custom_call.1} parent=11 // pred_fallthru
          _
      $region12: #{tpu_custom_call.1} parent=5 // pred_fallthru
        _
      %p127 = scmp.lt.s32.totalorder %s12, 2
      // Predicated region
      $region21: #{tpu_custom_call.1} parent=5 // pred_check
        %p128 = pneg %p127
      $region22: #{tpu_custom_call.1} parent=5 // pred_check_branch
        %130 = sbr.rel (%p128) target = $region24
      $region23: #{tpu_custom_call.1} parent=5 // pred_region
        // Predicated region
        $region25: #{tpu_custom_call.1} parent=23 // pred_check
          %p131 = pneg %p32
        $region26: #{tpu_custom_call.1} parent=23 // pred_check_branch
          %133 = sbr.rel (%p131) target = $region28
        $region27: #{tpu_custom_call.1} parent=23 // pred_region
          %p134 = scmp.lt.s32.totalorder %s12, 1
          %s135 = scalar_select %p134, %s12, 1
          %s136 = smul.addr %s135, 51
          %s137 = smul.addr %s136, 4
          %s138 = scalar_lea.vmem %s0, %s137
        $region28: #{tpu_custom_call.1} parent=23 // pred_fallthru
          _
      $region24: #{tpu_custom_call.1} parent=5 // pred_fallthru
        _
      %p139 = scmp.le.s32.totalorder 1, %s12
      %p140 = scmp.lt.s32.totalorder %s12, 3
      %p141 = pnand %p139, %p140
      %p142 = pneg %p141
      // Predicated region
      $region29: #{tpu_custom_call.1} parent=5 // pred_check
        _
      $region30: #{tpu_custom_call.1} parent=5 // pred_check_branch
        %144 = sbr.rel (%p141) target = $region32
      $region31: #{tpu_custom_call.1} parent=5 // pred_region
        %s145 = ssub.s32 %s12, 1
        %p146 = scmp.lt.s32.totalorder %s17, 1
        %s147 = scalar_select %p146, %s17, 1
        %s148 = smul.addr %s147, 51
        %s149 = smul.addr %s148, 4
        %s150 = scalar_lea.vmem %s0, %s149
        %p151 = pneg %p38
        %p152 = pneg %p35
        %p153 = pneg %p59
        %p154 = pneg %p56
        %p155 = pneg %p80
        %p156 = pneg %p77
        %p157 = pneg %p106
        %p158 = pneg %p103
        %s159 = sand.u32 %s93, 1
        %s160 = scalar_lea.sflag [#allocation3], %s159
        %s161 = sand.u32 %s93, 1
        %s162 = smul.addr %s161, 128
        %s163 = scalar_lea.vmem [#allocation2], %s162
        %p164 = scmp.lt.s32.totalorder %s17, 1
        %s165 = scalar_select %p164, %s17, 1
        %s166 = smul.addr %s165, 51
        %s167 = smul.addr %s166, 4
        %s168 = scalar_lea.vmem %s0, %s167
        %v170 = vld [vmem:[%s168] sm:$0xf]
        %v171 = vld [vmem:[%s168 + $0x4] sm:$0xf]
        %v172 = vld [vmem:[%s168 + $0xc] sm:$0xf]
        %v173 = vld [vmem:[%s168 + $0x10] sm:$0xf]
        %v174 = vld [vmem:[%s168 + $0x18] sm:$0xf]
        %v175 = vld [vmem:[%s168 + $0x1c] sm:$0xf]
        %v176 = vld [vmem:[%s168 + $0x24] sm:$0xf]
        %v177 = vld [vmem:[%s168 + $0x28] sm:$0xf]
        %v178 = vld [vmem:[%s168 + $0x30] sm:$0xf]
        %v179 = vld [vmem:[%s168 + $0x34] sm:$0xf]
        %v180 = vld [vmem:[%s168 + $0x3c] sm:$0xf]
        %v181 = vld [vmem:[%s168 + $0x40] sm:$0xf]
        %v182 = vld [vmem:[%s168 + $0x48] sm:$0xf]
        %v183 = vld [vmem:[%s168 + $0x4c] sm:$0xf]
        %v184 = vld [vmem:[%s168 + $0x54] sm:$0xf]
        %v185 = vld [vmem:[%s168 + $0x58] sm:$0xf]
        %v186 = vld [vmem:[%s168 + $0x60] sm:$0xf]
        %v187 = vld [vmem:[%s168 + $0x64] sm:$0xf]
        %v188 = vld [vmem:[%s168 + $0x6c] sm:$0xf]
        %v189 = vld [vmem:[%s168 + $0x70] sm:$0xf]
        %v190 = vld [vmem:[%s168 + $0x78] sm:$0xf]
        %v191 = vld [vmem:[%s168 + $0x7c] sm:$0xf]
        %v192 = vld [vmem:[%s168 + $0x84] sm:$0xf]
        %v193 = vld [vmem:[%s168 + $0x88] sm:$0xf]
        %v194 = vld [vmem:[%s168 + $0x90] sm:$0xf]
        %v195 = vld [vmem:[%s168 + $0x94] sm:$0xf]
        %v196 = vld [vmem:[%s168 + $0x9c] sm:$0xf]
        %v197 = vld [vmem:[%s168 + $0xa0] sm:$0xf]
        %v198 = vld [vmem:[%s168 + $0xa8] sm:$0xf]
        %v199 = vld [vmem:[%s168 + $0xac] sm:$0xf]
        %v200 = vld [vmem:[%s168 + $0xb4] sm:$0xf]
        %v201 = vld [vmem:[%s168 + $0xb8] sm:$0xf]
        %v202 = vld [vmem:[%s1] sm:$0xf]
        %v203 = vld [vmem:[%s1 + $0x4] sm:$0xf]
        %v204 = vld [vmem:[%s168 + $0x8] sm:$0x1]
        %v205 = vld [vmem:[%s168 + $0x14] sm:$0x1]
        %v206 = vld [vmem:[%s168 + $0x20] sm:$0x1]
        %v207 = vld [vmem:[%s168 + $0x2c] sm:$0x1]
        %v208 = vld [vmem:[%s168 + $0x38] sm:$0x1]
        %v209 = vld [vmem:[%s168 + $0x44] sm:$0x1]
        %v210 = vld [vmem:[%s168 + $0x50] sm:$0x1]
        %v211 = vld [vmem:[%s168 + $0x5c] sm:$0x1]
        %v212 = vld [vmem:[%s168 + $0x68] sm:$0x1]
        %v213 = vld [vmem:[%s168 + $0x74] sm:$0x1]
        %v214 = vld [vmem:[%s168 + $0x80] sm:$0x1]
        %v215 = vld [vmem:[%s168 + $0x8c] sm:$0x1]
        %v216 = vld [vmem:[%s168 + $0x98] sm:$0x1]
        %v217 = vld [vmem:[%s168 + $0xa4] sm:$0x1]
        %v218 = vld [vmem:[%s168 + $0xb0] sm:$0x1]
        %v219 = vld [vmem:[%s168 + $0xbc] sm:$0x1]
        %vm220 = vsmask.f32 3328
        %vm221 = vsmask.f32 7440
        %vm222 = vmor %vm220, %vm221
        %v224 = vshrl.u32 %v170, 16
        %v226 = vrot.slane %v224, 4
        %v227 = vshll.u32 %v170, 16
        %v229 = vrot.slane %v227, 5
        %v230 = vor.u32 %v226, %v229
        %v231 = vrot.slane %v230, 4
        %v233 = vshll.u32 %v171, 16
        %v235 = vrot.slane %v233, 5
        %v236 = vsel %vm222, %v231, %v235
        %v237 = vshrl.u32 %v171, 16
        %v239 = vrot.slane %v237, 4
        %v240 = vor.u32 %v239, %v235
        %v241 = vrot.slane %v240, 4
        %v243 = vshll.u32 %v204, 16
        %v245 = vrot.slane %v243, 5
        %v246 = vsel %vm222, %v241, %v245
        %v248 = vshrl.u32 %v172, 16
        %v250 = vrot.slane %v248, 4
        %v251 = vshll.u32 %v172, 16
        %v253 = vrot.slane %v251, 5
        %v254 = vor.u32 %v250, %v253
        %v255 = vrot.slane %v254, 4
        %v257 = vshll.u32 %v173, 16
        %v259 = vrot.slane %v257, 5
        %v260 = vsel %vm222, %v255, %v259
        %v261 = vshrl.u32 %v173, 16
        %v263 = vrot.slane %v261, 4
        %v264 = vor.u32 %v263, %v259
        %v265 = vrot.slane %v264, 4
        %v267 = vshll.u32 %v205, 16
        %v269 = vrot.slane %v267, 5
        %v270 = vsel %vm222, %v265, %v269
        %v272 = vshrl.u32 %v174, 16
        %v274 = vrot.slane %v272, 4
        %v275 = vshll.u32 %v174, 16
        %v277 = vrot.slane %v275, 5
        %v278 = vor.u32 %v274, %v277
        %v279 = vrot.slane %v278, 4
        %v281 = vshll.u32 %v175, 16
        %v283 = vrot.slane %v281, 5
        %v284 = vsel %vm222, %v279, %v283
        %v285 = vshrl.u32 %v175, 16
        %v287 = vrot.slane %v285, 4
        %v288 = vor.u32 %v287, %v283
        %v289 = vrot.slane %v288, 4
        %v291 = vshll.u32 %v206, 16
        %v293 = vrot.slane %v291, 5
        %v294 = vsel %vm222, %v289, %v293
        %v296 = vshrl.u32 %v176, 16
        %v298 = vrot.slane %v296, 4
        %v299 = vshll.u32 %v176, 16
        %v301 = vrot.slane %v299, 5
        %v302 = vor.u32 %v298, %v301
        %v303 = vrot.slane %v302, 4
        %v305 = vshll.u32 %v177, 16
        %v307 = vrot.slane %v305, 5
        %v308 = vsel %vm222, %v303, %v307
        %v309 = vshrl.u32 %v177, 16
        %v311 = vrot.slane %v309, 4
        %v312 = vor.u32 %v311, %v307
        %v313 = vrot.slane %v312, 4
        %v315 = vshll.u32 %v207, 16
        %v317 = vrot.slane %v315, 5
        %v318 = vsel %vm222, %v313, %v317
        %v320 = vshrl.u32 %v178, 16
        %v322 = vrot.slane %v320, 4
        %v323 = vshll.u32 %v178, 16
        %v325 = vrot.slane %v323, 5
        %v326 = vor.u32 %v322, %v325
        %v327 = vrot.slane %v326, 4
        %v329 = vshll.u32 %v179, 16
        %v331 = vrot.slane %v329, 5
        %v332 = vsel %vm222, %v327, %v331
        %v333 = vshrl.u32 %v179, 16
        %v335 = vrot.slane %v333, 4
        %v336 = vor.u32 %v335, %v331
        %v337 = vrot.slane %v336, 4
        %v339 = vshll.u32 %v208, 16
        %v341 = vrot.slane %v339, 5
        %v342 = vsel %vm222, %v337, %v341
        %v344 = vshrl.u32 %v180, 16
        %v346 = vrot.slane %v344, 4
        %v347 = vshll.u32 %v180, 16
        %v349 = vrot.slane %v347, 5
        %v350 = vor.u32 %v346, %v349
        %v351 = vrot.slane %v350, 4
        %v353 = vshll.u32 %v181, 16
        %v355 = vrot.slane %v353, 5
        %v356 = vsel %vm222, %v351, %v355
        %v357 = vshrl.u32 %v181, 16
        %v359 = vrot.slane %v357, 4
        %v360 = vor.u32 %v359, %v355
        %v361 = vrot.slane %v360, 4
        %v363 = vshll.u32 %v209, 16
        %v365 = vrot.slane %v363, 5
        %v366 = vsel %vm222, %v361, %v365
        %v368 = vshrl.u32 %v182, 16
        %v370 = vrot.slane %v368, 4
        %v371 = vshll.u32 %v182, 16
        %v373 = vrot.slane %v371, 5
        %v374 = vor.u32 %v370, %v373
        %v375 = vrot.slane %v374, 4
        %v377 = vshll.u32 %v183, 16
        %v379 = vrot.slane %v377, 5
        %v380 = vsel %vm222, %v375, %v379
        %v381 = vshrl.u32 %v183, 16
        %v383 = vrot.slane %v381, 4
        %v384 = vor.u32 %v383, %v379
        %v385 = vrot.slane %v384, 4
        %v387 = vshll.u32 %v210, 16
        %v389 = vrot.slane %v387, 5
        %v390 = vsel %vm222, %v385, %v389
        %v392 = vshrl.u32 %v184, 16
        %v394 = vrot.slane %v392, 4
        %v395 = vshll.u32 %v184, 16
        %v397 = vrot.slane %v395, 5
        %v398 = vor.u32 %v394, %v397
        %v399 = vrot.slane %v398, 4
        %v401 = vshll.u32 %v185, 16
        %v403 = vrot.slane %v401, 5
        %v404 = vsel %vm222, %v399, %v403
        %v405 = vshrl.u32 %v185, 16
        %v407 = vrot.slane %v405, 4
        %v408 = vor.u32 %v407, %v403
        %v409 = vrot.slane %v408, 4
        %v411 = vshll.u32 %v211, 16
        %v413 = vrot.slane %v411, 5
        %v414 = vsel %vm222, %v409, %v413
        %v416 = vshrl.u32 %v186, 16
        %v418 = vrot.slane %v416, 4
        %v419 = vshll.u32 %v186, 16
        %v421 = vrot.slane %v419, 5
        %v422 = vor.u32 %v418, %v421
        %v423 = vrot.slane %v422, 4
        %v425 = vshll.u32 %v187, 16
        %v427 = vrot.slane %v425, 5
        %v428 = vsel %vm222, %v423, %v427
        %v429 = vshrl.u32 %v187, 16
        %v431 = vrot.slane %v429, 4
        %v432 = vor.u32 %v431, %v427
        %v433 = vrot.slane %v432, 4
        %v435 = vshll.u32 %v212, 16
        %v437 = vrot.slane %v435, 5
        %v438 = vsel %vm222, %v433, %v437
        %v440 = vshrl.u32 %v188, 16
        %v442 = vrot.slane %v440, 4
        %v443 = vshll.u32 %v188, 16
        %v445 = vrot.slane %v443, 5
        %v446 = vor.u32 %v442, %v445
        %v447 = vrot.slane %v446, 4
        %v449 = vshll.u32 %v189, 16
        %v451 = vrot.slane %v449, 5
        %v452 = vsel %vm222, %v447, %v451
        %v453 = vshrl.u32 %v189, 16
        %v455 = vrot.slane %v453, 4
        %v456 = vor.u32 %v455, %v451
        %v457 = vrot.slane %v456, 4
        %v459 = vshll.u32 %v213, 16
        %v461 = vrot.slane %v459, 5
        %v462 = vsel %vm222, %v457, %v461
        %v464 = vshrl.u32 %v190, 16
        %v466 = vrot.slane %v464, 4
        %v467 = vshll.u32 %v190, 16
        %v469 = vrot.slane %v467, 5
        %v470 = vor.u32 %v466, %v469
        %v471 = vrot.slane %v470, 4
        %v473 = vshll.u32 %v191, 16
        %v475 = vrot.slane %v473, 5
        %v476 = vsel %vm222, %v471, %v475
        %v477 = vshrl.u32 %v191, 16
        %v479 = vrot.slane %v477, 4
        %v480 = vor.u32 %v479, %v475
        %v481 = vrot.slane %v480, 4
        %v483 = vshll.u32 %v214, 16
        %v485 = vrot.slane %v483, 5
        %v486 = vsel %vm222, %v481, %v485
        %v488 = vshrl.u32 %v192, 16
        %v490 = vrot.slane %v488, 4
        %v491 = vshll.u32 %v192, 16
        %v493 = vrot.slane %v491, 5
        %v494 = vor.u32 %v490, %v493
        %v495 = vrot.slane %v494, 4
        %v497 = vshll.u32 %v193, 16
        %v499 = vrot.slane %v497, 5
        %v500 = vsel %vm222, %v495, %v499
        %v501 = vshrl.u32 %v193, 16
        %v503 = vrot.slane %v501, 4
        %v504 = vor.u32 %v503, %v499
        %v505 = vrot.slane %v504, 4
        %v507 = vshll.u32 %v215, 16
        %v509 = vrot.slane %v507, 5
        %v510 = vsel %vm222, %v505, %v509
        %v512 = vshrl.u32 %v194, 16
        %v514 = vrot.slane %v512, 4
        %v515 = vshll.u32 %v194, 16
        %v517 = vrot.slane %v515, 5
        %v518 = vor.u32 %v514, %v517
        %v519 = vrot.slane %v518, 4
        %v521 = vshll.u32 %v195, 16
        %v523 = vrot.slane %v521, 5
        %v524 = vsel %vm222, %v519, %v523
        %v525 = vshrl.u32 %v195, 16
        %v527 = vrot.slane %v525, 4
        %v528 = vor.u32 %v527, %v523
        %v529 = vrot.slane %v528, 4
        %v531 = vshll.u32 %v216, 16
        %v533 = vrot.slane %v531, 5
        %v534 = vsel %vm222, %v529, %v533
        %v536 = vshrl.u32 %v196, 16
        %v538 = vrot.slane %v536, 4
        %v539 = vshll.u32 %v196, 16
        %v541 = vrot.slane %v539, 5
        %v542 = vor.u32 %v538, %v541
        %v543 = vrot.slane %v542, 4
        %v545 = vshll.u32 %v197, 16
        %v547 = vrot.slane %v545, 5
        %v548 = vsel %vm222, %v543, %v547
        %v549 = vshrl.u32 %v197, 16
        %v551 = vrot.slane %v549, 4
        %v552 = vor.u32 %v551, %v547
        %v553 = vrot.slane %v552, 4
        %v555 = vshll.u32 %v217, 16
        %v557 = vrot.slane %v555, 5
        %v558 = vsel %vm222, %v553, %v557
        %v560 = vshrl.u32 %v198, 16
        %v562 = vrot.slane %v560, 4
        %v563 = vshll.u32 %v198, 16
        %v565 = vrot.slane %v563, 5
        %v566 = vor.u32 %v562, %v565
        %v567 = vrot.slane %v566, 4
        %v569 = vshll.u32 %v199, 16
        %v571 = vrot.slane %v569, 5
        %v572 = vsel %vm222, %v567, %v571
        %v573 = vshrl.u32 %v199, 16
        %v575 = vrot.slane %v573, 4
        %v576 = vor.u32 %v575, %v571
        %v577 = vrot.slane %v576, 4
        %v579 = vshll.u32 %v218, 16
        %v581 = vrot.slane %v579, 5
        %v582 = vsel %vm222, %v577, %v581
        %v584 = vshrl.u32 %v200, 16
        %v586 = vrot.slane %v584, 4
        %v587 = vshll.u32 %v200, 16
        %v589 = vrot.slane %v587, 5
        %v590 = vor.u32 %v586, %v589
        %v591 = vrot.slane %v590, 4
        %v593 = vshll.u32 %v201, 16
        %v595 = vrot.slane %v593, 5
        %v596 = vsel %vm222, %v591, %v595
        %v597 = vshrl.u32 %v201, 16
        %v599 = vrot.slane %v597, 4
        %v600 = vor.u32 %v599, %v595
        %v601 = vrot.slane %v600, 4
        %v603 = vshll.u32 %v219, 16
        %v605 = vrot.slane %v603, 5
        %v606 = vsel %vm222, %v601, %v605
        %s607 = scalar_lea.vmem %s1, 8
        %v608 = vld [vmem:[%s607] sm:$0xf]
        %v609 = vld [vmem:[%s607 + $0x4] sm:$0xf]
        %v610 = vunpack.c.l.b16 %v236
        %v611 = vunpack.c.l.b16 %v246
        %v612 = vunpack.c.l.b16 %v260
        %v613 = vunpack.c.l.b16 %v270
        %v614 = vunpack.c.l.b16 %v284
        %v615 = vunpack.c.l.b16 %v294
        %v616 = vunpack.c.l.b16 %v308
        %v617 = vunpack.c.l.b16 %v318
        %v618 = vunpack.c.l.b16 %v332
        %v619 = vunpack.c.l.b16 %v342
        %v620 = vunpack.c.l.b16 %v356
        %v621 = vunpack.c.l.b16 %v366
        %v622 = vunpack.c.l.b16 %v380
        %v623 = vunpack.c.l.b16 %v390
        %v624 = vunpack.c.l.b16 %v404
        %v625 = vunpack.c.l.b16 %v414
        %v626 = vunpack.c.l.b16 %v428
        %v627 = vunpack.c.l.b16 %v438
        %v628 = vunpack.c.l.b16 %v452
        %v629 = vunpack.c.l.b16 %v462
        %v630 = vunpack.c.l.b16 %v476
        %v631 = vunpack.c.l.b16 %v486
        %v632 = vunpack.c.l.b16 %v500
        %v633 = vunpack.c.l.b16 %v510
        %v634 = vunpack.c.l.b16 %v524
        %v635 = vunpack.c.l.b16 %v534
        %v636 = vunpack.c.l.b16 %v548
        %v637 = vunpack.c.l.b16 %v558
        %v638 = vunpack.c.l.b16 %v572
        %v639 = vunpack.c.l.b16 %v582
        %v640 = vunpack.c.l.b16 %v596
        %v641 = vunpack.c.l.b16 %v606
        %v642 = vpack.c.b16 %v611, %v610
        %v643 = vpack.c.b16 %v613, %v612
        %v644 = vpack.c.b16 %v615, %v614
        %v645 = vpack.c.b16 %v617, %v616
        %v646 = vpack.c.b16 %v619, %v618
        %v647 = vpack.c.b16 %v621, %v620
        %v648 = vpack.c.b16 %v623, %v622
        %v649 = vpack.c.b16 %v625, %v624
        %v650 = vpack.c.b16 %v627, %v626
        %v651 = vpack.c.b16 %v629, %v628
        %v652 = vpack.c.b16 %v631, %v630
        %v653 = vpack.c.b16 %v633, %v632
        %v654 = vpack.c.b16 %v635, %v634
        %v655 = vpack.c.b16 %v637, %v636
        %v656 = vpack.c.b16 %v639, %v638
        %v657 = vpack.c.b16 %v641, %v640
        %v660 = vunpack.c.l.b16 %v608
        %v661 = vunpack.c.l.b16 %v609
        %v662 = vpack.c.b16 %v661, %v660
        %vm664 = vcmask 130048
        %v666 = vsel %vm664, %v642, 0
        %v669 = vsel %vm664, %v643, 0
        %v672 = vsel %vm664, %v644, 0
        %v675 = vsel %vm664, %v645, 0
        %v678 = vsel %vm664, %v646, 0
        %v681 = vsel %vm664, %v647, 0
        %v684 = vsel %vm664, %v648, 0
        %v687 = vsel %vm664, %v649, 0
        %v690 = vsel %vm664, %v650, 0
        %v693 = vsel %vm664, %v651, 0
        %v696 = vsel %vm664, %v652, 0
        %v699 = vsel %vm664, %v653, 0
        %v702 = vsel %vm664, %v654, 0
        %v705 = vsel %vm664, %v655, 0
        %v708 = vsel %vm664, %v656, 0
        %v711 = vsel %vm664, %v657, 0
        %713 = vmatprep.subr.bf16.mxu0 0
        %714 = vmatpush1.bf16.msra.mxu0 0
        %715 = vmatprep.subr.bf16.mxu0 0
        %716 = vmatpush1.bf16.msra.mxu0 0
        %717 = vmatprep.subr.bf16.mxu0 0
        %718 = vmatpush1.bf16.msra.mxu0 0
        %719 = vmatprep.subr.bf16.mxu0 0
        %720 = vmatpush1.bf16.msra.mxu0 0
        %721 = vmatprep.subr.bf16.mxu0 0
        %722 = vmatpush1.bf16.msra.mxu0 0
        %723 = vmatprep.subr.bf16.mxu0 0
        %724 = vmatpush1.bf16.msra.mxu0 0
        %725 = vmatprep.subr.bf16.mxu0 0
        %726 = vmatpush1.bf16.msra.mxu0 0
        %727 = vmatprep.subr.bf16.mxu0 0
        %728 = vmatpush1.bf16.msra.mxu0 %v662
        %729 = vmatprep.subr.bf16.mxu0 0
        %730 = vmatpush2.bf16.msra.mxu0 0
        %731 = vmatprep.subr.bf16.mxu0 0
        %732 = vmatpush2.bf16.msra.mxu0 0
        %733 = vmatprep.subr.bf16.mxu0 0
        %734 = vmatpush2.bf16.msra.mxu0 0
        %735 = vmatprep.subr.bf16.mxu0 0
        %736 = vmatpush2.bf16.msra.mxu0 0
        %737 = vmatprep.subr.bf16.mxu0 0
        %738 = vmatpush2.bf16.msra.mxu0 0
        %739 = vmatprep.subr.bf16.mxu0 0
        %740 = vmatpush2.bf16.msra.mxu0 0
        %741 = vmatprep.subr.bf16.mxu0 0
        %742 = vmatpush2.bf16.msra.mxu0 0
        %743 = vmatprep.subr.bf16.mxu0 0
        %744 = vmatpush2.bf16.msra.mxu0 0
        %745 = vmatprep.mubr.bf16.mxu0 0
        %746 = vmatmul.mubr.bf16.gmra.mxu0 %v666
        %v747 = vpop.f32.mrf.mxu0
        %v748 = vadd.f32 0.0, %v747
        %v749 = vpop.f32.mrf.mxu0
        %v750 = vpop.f32.mrf.mxu0
        %v751 = vadd.f32 0.0, %v750
        %v752 = vpop.f32.mrf.mxu0
        %753 = vmatprep.mubr.bf16.mxu0 0
        %754 = vmatmul.mubr.bf16.gmra.mxu0 %v669
        %v755 = vpop.f32.mrf.mxu0
        %v756 = vadd.f32 0.0, %v755
        %v757 = vpop.f32.mrf.mxu0
        %v758 = vpop.f32.mrf.mxu0
        %v759 = vadd.f32 0.0, %v758
        %v760 = vpop.f32.mrf.mxu0
        %761 = vmatprep.mubr.bf16.mxu0 0
        %762 = vmatmul.mubr.bf16.gmra.mxu0 %v672
        %v763 = vpop.f32.mrf.mxu0
        %v764 = vadd.f32 0.0, %v763
        %v765 = vpop.f32.mrf.mxu0
        %v766 = vpop.f32.mrf.mxu0
        %v767 = vadd.f32 0.0, %v766
        %v768 = vpop.f32.mrf.mxu0
        %769 = vmatprep.mubr.bf16.mxu0 0
        %770 = vmatmul.mubr.bf16.gmra.mxu0 %v675
        %v771 = vpop.f32.mrf.mxu0
        %v772 = vadd.f32 0.0, %v771
        %v773 = vpop.f32.mrf.mxu0
        %v774 = vpop.f32.mrf.mxu0
        %v775 = vadd.f32 0.0, %v774
        %v776 = vpop.f32.mrf.mxu0
        %777 = vmatprep.mubr.bf16.mxu0 0
        %778 = vmatmul.mubr.bf16.gmra.mxu0 %v678
        %v779 = vpop.f32.mrf.mxu0
        %v780 = vadd.f32 0.0, %v779
        %v781 = vpop.f32.mrf.mxu0
        %v782 = vpop.f32.mrf.mxu0
        %v783 = vadd.f32 0.0, %v782
        %v784 = vpop.f32.mrf.mxu0
        %785 = vmatprep.mubr.bf16.mxu0 0
        %786 = vmatmul.mubr.bf16.gmra.mxu0 %v681
        %v787 = vpop.f32.mrf.mxu0
        %v788 = vadd.f32 0.0, %v787
        %v789 = vpop.f32.mrf.mxu0
        %v790 = vpop.f32.mrf.mxu0
        %v791 = vadd.f32 0.0, %v790
        %v792 = vpop.f32.mrf.mxu0
        %793 = vmatprep.mubr.bf16.mxu0 0
        %794 = vmatmul.mubr.bf16.gmra.mxu0 %v684
        %v795 = vpop.f32.mrf.mxu0
        %v796 = vadd.f32 0.0, %v795
        %v797 = vpop.f32.mrf.mxu0
        %v798 = vpop.f32.mrf.mxu0
        %v799 = vadd.f32 0.0, %v798
        %v800 = vpop.f32.mrf.mxu0
        %801 = vmatprep.mubr.bf16.mxu0 0
        %802 = vmatmul.mubr.bf16.gmra.mxu0 %v687
        %v803 = vpop.f32.mrf.mxu0
        %v804 = vadd.f32 0.0, %v803
        %v805 = vpop.f32.mrf.mxu0
        %v806 = vpop.f32.mrf.mxu0
        %v807 = vadd.f32 0.0, %v806
        %v808 = vpop.f32.mrf.mxu0
        %809 = vmatprep.mubr.bf16.mxu0 0
        %810 = vmatmul.mubr.bf16.gmra.mxu0 %v690
        %v811 = vpop.f32.mrf.mxu0
        %v812 = vadd.f32 0.0, %v811
        %v813 = vpop.f32.mrf.mxu0
        %v814 = vpop.f32.mrf.mxu0
        %v815 = vadd.f32 0.0, %v814
        %v816 = vpop.f32.mrf.mxu0
        %817 = vmatprep.mubr.bf16.mxu0 0
        %818 = vmatmul.mubr.bf16.gmra.mxu0 %v693
        %v819 = vpop.f32.mrf.mxu0
        %v820 = vadd.f32 0.0, %v819
        %v821 = vpop.f32.mrf.mxu0
        %v822 = vpop.f32.mrf.mxu0
        %v823 = vadd.f32 0.0, %v822
        %v824 = vpop.f32.mrf.mxu0
        %825 = vmatprep.mubr.bf16.mxu0 0
        %826 = vmatmul.mubr.bf16.gmra.mxu0 %v696
        %v827 = vpop.f32.mrf.mxu0
        %v828 = vadd.f32 0.0, %v827
        %v829 = vpop.f32.mrf.mxu0
        %v830 = vpop.f32.mrf.mxu0
        %v831 = vadd.f32 0.0, %v830
        %v832 = vpop.f32.mrf.mxu0
        %833 = vmatprep.mubr.bf16.mxu0 0
        %834 = vmatmul.mubr.bf16.gmra.mxu0 %v699
        %v835 = vpop.f32.mrf.mxu0
        %v836 = vadd.f32 0.0, %v835
        %v837 = vpop.f32.mrf.mxu0
        %v838 = vpop.f32.mrf.mxu0
        %v839 = vadd.f32 0.0, %v838
        %v840 = vpop.f32.mrf.mxu0
        %841 = vmatprep.mubr.bf16.mxu0 0
        %842 = vmatmul.mubr.bf16.gmra.mxu0 %v702
        %v843 = vpop.f32.mrf.mxu0
        %v844 = vadd.f32 0.0, %v843
        %v845 = vpop.f32.mrf.mxu0
        %v846 = vpop.f32.mrf.mxu0
        %v847 = vadd.f32 0.0, %v846
        %v848 = vpop.f32.mrf.mxu0
        %849 = vmatprep.mubr.bf16.mxu0 0
        %850 = vmatmul.mubr.bf16.gmra.mxu0 %v705
        %v851 = vpop.f32.mrf.mxu0
        %v852 = vadd.f32 0.0, %v851
        %v853 = vpop.f32.mrf.mxu0
        %v854 = vpop.f32.mrf.mxu0
        %v855 = vadd.f32 0.0, %v854
        %v856 = vpop.f32.mrf.mxu0
        %857 = vmatprep.mubr.bf16.mxu0 0
        %858 = vmatmul.mubr.bf16.gmra.mxu0 %v708
        %v859 = vpop.f32.mrf.mxu0
        %v860 = vadd.f32 0.0, %v859
        %v861 = vpop.f32.mrf.mxu0
        %v862 = vpop.f32.mrf.mxu0
        %v863 = vadd.f32 0.0, %v862
        %v864 = vpop.f32.mrf.mxu0
        %865 = vmatprep.mubr.bf16.mxu0 0
        %866 = vmatmul.mubr.bf16.gmra.mxu0 %v711
        %v867 = vpop.f32.mrf.mxu0
        %v868 = vadd.f32 0.0, %v867
        %v869 = vpop.f32.mrf.mxu0
        %v870 = vpop.f32.mrf.mxu0
        %v871 = vadd.f32 0.0, %v870
        %v872 = vpop.f32.mrf.mxu0
        %873 = vdwg.mxu0
        %v906 = vunpack.c.l.b16 %v170
        %v907 = vunpack.c.l.b16 %v171
        %v908 = vunpack.c.l.b16 %v172
        %v909 = vunpack.c.l.b16 %v173
        %v910 = vunpack.c.l.b16 %v174
        %v911 = vunpack.c.l.b16 %v175
        %v912 = vunpack.c.l.b16 %v176
        %v913 = vunpack.c.l.b16 %v177
        %v914 = vunpack.c.l.b16 %v178
        %v915 = vunpack.c.l.b16 %v179
        %v916 = vunpack.c.l.b16 %v180
        %v917 = vunpack.c.l.b16 %v181
        %v918 = vunpack.c.l.b16 %v182
        %v919 = vunpack.c.l.b16 %v183
        %v920 = vunpack.c.l.b16 %v184
        %v921 = vunpack.c.l.b16 %v185
        %v922 = vunpack.c.l.b16 %v186
        %v923 = vunpack.c.l.b16 %v187
        %v924 = vunpack.c.l.b16 %v188
        %v925 = vunpack.c.l.b16 %v189
        %v926 = vunpack.c.l.b16 %v190
        %v927 = vunpack.c.l.b16 %v191
        %v928 = vunpack.c.l.b16 %v192
        %v929 = vunpack.c.l.b16 %v193
        %v930 = vunpack.c.l.b16 %v194
        %v931 = vunpack.c.l.b16 %v195
        %v932 = vunpack.c.l.b16 %v196
        %v933 = vunpack.c.l.b16 %v197
        %v934 = vunpack.c.l.b16 %v198
        %v935 = vunpack.c.l.b16 %v199
        %v936 = vunpack.c.l.b16 %v200
        %v937 = vunpack.c.l.b16 %v201
        %v938 = vpack.c.b16 %v907, %v906
        %v939 = vpack.c.b16 %v909, %v908
        %v940 = vpack.c.b16 %v911, %v910
        %v941 = vpack.c.b16 %v913, %v912
        %v942 = vpack.c.b16 %v915, %v914
        %v943 = vpack.c.b16 %v917, %v916
        %v944 = vpack.c.b16 %v919, %v918
        %v945 = vpack.c.b16 %v921, %v920
        %v946 = vpack.c.b16 %v923, %v922
        %v947 = vpack.c.b16 %v925, %v924
        %v948 = vpack.c.b16 %v927, %v926
        %v949 = vpack.c.b16 %v929, %v928
        %v950 = vpack.c.b16 %v931, %v930
        %v951 = vpack.c.b16 %v933, %v932
        %v952 = vpack.c.b16 %v935, %v934
        %v953 = vpack.c.b16 %v937, %v936
        %v956 = vunpack.c.l.b16 %v202
        %v957 = vunpack.c.l.b16 %v203
        %v958 = vpack.c.b16 %v957, %v956
        %v961 = vsel %vm664, %v938, 0
        %v964 = vsel %vm664, %v939, 0
        %v967 = vsel %vm664, %v940, 0
        %v970 = vsel %vm664, %v941, 0
        %v973 = vsel %vm664, %v942, 0
        %v976 = vsel %vm664, %v943, 0
        %v979 = vsel %vm664, %v944, 0
        %v982 = vsel %vm664, %v945, 0
        %v985 = vsel %vm664, %v946, 0
        %v988 = vsel %vm664, %v947, 0
        %v991 = vsel %vm664, %v948, 0
        %v994 = vsel %vm664, %v949, 0
        %v997 = vsel %vm664, %v950, 0
        %v1000 = vsel %vm664, %v951, 0
        %v1003 = vsel %vm664, %v952, 0
        %v1006 = vsel %vm664, %v953, 0
        %1008 = vmatprep.subr.bf16.mxu0 0
        %1009 = vmatpush1.bf16.msra.mxu0 0
        %1010 = vmatprep.subr.bf16.mxu0 0
        %1011 = vmatpush1.bf16.msra.mxu0 0
        %1012 = vmatprep.subr.bf16.mxu0 0
        %1013 = vmatpush1.bf16.msra.mxu0 0
        %1014 = vmatprep.subr.bf16.mxu0 0
        %1015 = vmatpush1.bf16.msra.mxu0 0
        %1016 = vmatprep.subr.bf16.mxu0 0
        %1017 = vmatpush1.bf16.msra.mxu0 0
        %1018 = vmatprep.subr.bf16.mxu0 0
        %1019 = vmatpush1.bf16.msra.mxu0 0
        %1020 = vmatprep.subr.bf16.mxu0 0
        %1021 = vmatpush1.bf16.msra.mxu0 0
        %1022 = vmatprep.subr.bf16.mxu0 0
        %1023 = vmatpush1.bf16.msra.mxu0 %v958
        %1024 = vmatprep.subr.bf16.mxu0 0
        %1025 = vmatpush2.bf16.msra.mxu0 0
        %1026 = vmatprep.subr.bf16.mxu0 0
        %1027 = vmatpush2.bf16.msra.mxu0 0
        %1028 = vmatprep.subr.bf16.mxu0 0
        %1029 = vmatpush2.bf16.msra.mxu0 0
        %1030 = vmatprep.subr.bf16.mxu0 0
        %1031 = vmatpush2.bf16.msra.mxu0 0
        %1032 = vmatprep.subr.bf16.mxu0 0
        %1033 = vmatpush2.bf16.msra.mxu0 0
        %1034 = vmatprep.subr.bf16.mxu0 0
        %1035 = vmatpush2.bf16.msra.mxu0 0
        %1036 = vmatprep.subr.bf16.mxu0 0
        %1037 = vmatpush2.bf16.msra.mxu0 0
        %1038 = vmatprep.subr.bf16.mxu0 0
        %1039 = vmatpush2.bf16.msra.mxu0 0
        %1040 = vmatprep.mubr.bf16.mxu0 0
        %1041 = vmatmul.mubr.bf16.gmra.mxu0 %v961
        %v1042 = vpop.f32.mrf.mxu0
        %v1043 = vadd.f32 %v748, %v1042
        %v1044 = vpop.f32.mrf.mxu0
        %v1045 = vpop.f32.mrf.mxu0
        %v1046 = vadd.f32 %v751, %v1045
        %v1047 = vpop.f32.mrf.mxu0
        %1048 = vmatprep.mubr.bf16.mxu0 0
        %1049 = vmatmul.mubr.bf16.gmra.mxu0 %v964
        %v1050 = vpop.f32.mrf.mxu0
        %v1051 = vadd.f32 %v756, %v1050
        %v1052 = vpop.f32.mrf.mxu0
        %v1053 = vpop.f32.mrf.mxu0
        %v1054 = vadd.f32 %v759, %v1053
        %v1055 = vpop.f32.mrf.mxu0
        %1056 = vmatprep.mubr.bf16.mxu0 0
        %1057 = vmatmul.mubr.bf16.gmra.mxu0 %v967
        %v1058 = vpop.f32.mrf.mxu0
        %v1059 = vadd.f32 %v764, %v1058
        %v1060 = vpop.f32.mrf.mxu0
        %v1061 = vpop.f32.mrf.mxu0
        %v1062 = vadd.f32 %v767, %v1061
        %v1063 = vpop.f32.mrf.mxu0
        %1064 = vmatprep.mubr.bf16.mxu0 0
        %1065 = vmatmul.mubr.bf16.gmra.mxu0 %v970
        %v1066 = vpop.f32.mrf.mxu0
        %v1067 = vadd.f32 %v772, %v1066
        %v1068 = vpop.f32.mrf.mxu0
        %v1069 = vpop.f32.mrf.mxu0
        %v1070 = vadd.f32 %v775, %v1069
        %v1071 = vpop.f32.mrf.mxu0
        %1072 = vmatprep.mubr.bf16.mxu0 0
        %1073 = vmatmul.mubr.bf16.gmra.mxu0 %v973
        %v1074 = vpop.f32.mrf.mxu0
        %v1075 = vadd.f32 %v780, %v1074
        %v1076 = vpop.f32.mrf.mxu0
        %v1077 = vpop.f32.mrf.mxu0
        %v1078 = vadd.f32 %v783, %v1077
        %v1079 = vpop.f32.mrf.mxu0
        %1080 = vmatprep.mubr.bf16.mxu0 0
        %1081 = vmatmul.mubr.bf16.gmra.mxu0 %v976
        %v1082 = vpop.f32.mrf.mxu0
        %v1083 = vadd.f32 %v788, %v1082
        %v1084 = vpop.f32.mrf.mxu0
        %v1085 = vpop.f32.mrf.mxu0
        %v1086 = vadd.f32 %v791, %v1085
        %v1087 = vpop.f32.mrf.mxu0
        %1088 = vmatprep.mubr.bf16.mxu0 0
        %1089 = vmatmul.mubr.bf16.gmra.mxu0 %v979
        %v1090 = vpop.f32.mrf.mxu0
        %v1091 = vadd.f32 %v796, %v1090
        %v1092 = vpop.f32.mrf.mxu0
        %v1093 = vpop.f32.mrf.mxu0
        %v1094 = vadd.f32 %v799, %v1093
        %v1095 = vpop.f32.mrf.mxu0
        %1096 = vmatprep.mubr.bf16.mxu0 0
        %1097 = vmatmul.mubr.bf16.gmra.mxu0 %v982
        %v1098 = vpop.f32.mrf.mxu0
        %v1099 = vadd.f32 %v804, %v1098
        %v1100 = vpop.f32.mrf.mxu0
        %v1101 = vpop.f32.mrf.mxu0
        %v1102 = vadd.f32 %v807, %v1101
        %v1103 = vpop.f32.mrf.mxu0
        %1104 = vmatprep.mubr.bf16.mxu0 0
        %1105 = vmatmul.mubr.bf16.gmra.mxu0 %v985
        %v1106 = vpop.f32.mrf.mxu0
        %v1107 = vadd.f32 %v812, %v1106
        %v1108 = vpop.f32.mrf.mxu0
        %v1109 = vpop.f32.mrf.mxu0
        %v1110 = vadd.f32 %v815, %v1109
        %v1111 = vpop.f32.mrf.mxu0
        %1112 = vmatprep.mubr.bf16.mxu0 0
        %1113 = vmatmul.mubr.bf16.gmra.mxu0 %v988
        %v1114 = vpop.f32.mrf.mxu0
        %v1115 = vadd.f32 %v820, %v1114
        %v1116 = vpop.f32.mrf.mxu0
        %v1117 = vpop.f32.mrf.mxu0
        %v1118 = vadd.f32 %v823, %v1117
        %v1119 = vpop.f32.mrf.mxu0
        %1120 = vmatprep.mubr.bf16.mxu0 0
        %1121 = vmatmul.mubr.bf16.gmra.mxu0 %v991
        %v1122 = vpop.f32.mrf.mxu0
        %v1123 = vadd.f32 %v828, %v1122
        %v1124 = vpop.f32.mrf.mxu0
        %v1125 = vpop.f32.mrf.mxu0
        %v1126 = vadd.f32 %v831, %v1125
        %v1127 = vpop.f32.mrf.mxu0
        %1128 = vmatprep.mubr.bf16.mxu0 0
        %1129 = vmatmul.mubr.bf16.gmra.mxu0 %v994
        %v1130 = vpop.f32.mrf.mxu0
        %v1131 = vadd.f32 %v836, %v1130
        %v1132 = vpop.f32.mrf.mxu0
        %v1133 = vpop.f32.mrf.mxu0
        %v1134 = vadd.f32 %v839, %v1133
        %v1135 = vpop.f32.mrf.mxu0
        %1136 = vmatprep.mubr.bf16.mxu0 0
        %1137 = vmatmul.mubr.bf16.gmra.mxu0 %v997
        %v1138 = vpop.f32.mrf.mxu0
        %v1139 = vadd.f32 %v844, %v1138
        %v1140 = vpop.f32.mrf.mxu0
        %v1141 = vpop.f32.mrf.mxu0
        %v1142 = vadd.f32 %v847, %v1141
        %v1143 = vpop.f32.mrf.mxu0
        %1144 = vmatprep.mubr.bf16.mxu0 0
        %1145 = vmatmul.mubr.bf16.gmra.mxu0 %v1000
        %v1146 = vpop.f32.mrf.mxu0
        %v1147 = vadd.f32 %v852, %v1146
        %v1148 = vpop.f32.mrf.mxu0
        %v1149 = vpop.f32.mrf.mxu0
        %v1150 = vadd.f32 %v855, %v1149
        %v1151 = vpop.f32.mrf.mxu0
        %1152 = vmatprep.mubr.bf16.mxu0 0
        %1153 = vmatmul.mubr.bf16.gmra.mxu0 %v1003
        %v1154 = vpop.f32.mrf.mxu0
        %v1155 = vadd.f32 %v860, %v1154
        %v1156 = vpop.f32.mrf.mxu0
        %v1157 = vpop.f32.mrf.mxu0
        %v1158 = vadd.f32 %v863, %v1157
        %v1159 = vpop.f32.mrf.mxu0
        %1160 = vmatprep.mubr.bf16.mxu0 0
        %1161 = vmatmul.mubr.bf16.gmra.mxu0 %v1006
        %v1162 = vpop.f32.mrf.mxu0
        %v1163 = vadd.f32 %v868, %v1162
        %v1164 = vpop.f32.mrf.mxu0
        %v1165 = vpop.f32.mrf.mxu0
        %v1166 = vadd.f32 %v871, %v1165
        %v1167 = vpop.f32.mrf.mxu0
        %1168 = vdwg.mxu0
        %s1169 = scalar_lea.vmem %s168, 12
        %v1170 = vld [vmem:[%s1169] sm:$0xf]
        %v1171 = vld [vmem:[%s1169 + $0x4] sm:$0xf]
        %v1172 = vld [vmem:[%s1169 + $0xc] sm:$0xf]
        %v1173 = vld [vmem:[%s1169 + $0x10] sm:$0xf]
        %v1174 = vld [vmem:[%s1169 + $0x18] sm:$0xf]
        %v1175 = vld [vmem:[%s1169 + $0x1c] sm:$0xf]
        %v1176 = vld [vmem:[%s1169 + $0x24] sm:$0xf]
        %v1177 = vld [vmem:[%s1169 + $0x28] sm:$0xf]
        %v1178 = vld [vmem:[%s1169 + $0x30] sm:$0xf]
        %v1179 = vld [vmem:[%s1169 + $0x34] sm:$0xf]
        %v1180 = vld [vmem:[%s1169 + $0x3c] sm:$0xf]
        %v1181 = vld [vmem:[%s1169 + $0x40] sm:$0xf]
        %v1182 = vld [vmem:[%s1169 + $0x48] sm:$0xf]
        %v1183 = vld [vmem:[%s1169 + $0x4c] sm:$0xf]
        %v1184 = vld [vmem:[%s1169 + $0x54] sm:$0xf]
        %v1185 = vld [vmem:[%s1169 + $0x58] sm:$0xf]
        %v1186 = vld [vmem:[%s1169 + $0x60] sm:$0xf]
        %v1187 = vld [vmem:[%s1169 + $0x64] sm:$0xf]
        %v1188 = vld [vmem:[%s1169 + $0x6c] sm:$0xf]
        %v1189 = vld [vmem:[%s1169 + $0x70] sm:$0xf]
        %v1190 = vld [vmem:[%s1169 + $0x78] sm:$0xf]
        %v1191 = vld [vmem:[%s1169 + $0x7c] sm:$0xf]
        %v1192 = vld [vmem:[%s1169 + $0x84] sm:$0xf]
        %v1193 = vld [vmem:[%s1169 + $0x88] sm:$0xf]
        %v1194 = vld [vmem:[%s1169 + $0x90] sm:$0xf]
        %v1195 = vld [vmem:[%s1169 + $0x94] sm:$0xf]
        %v1196 = vld [vmem:[%s1169 + $0x9c] sm:$0xf]
        %v1197 = vld [vmem:[%s1169 + $0xa0] sm:$0xf]
        %v1198 = vld [vmem:[%s1169 + $0xa8] sm:$0xf]
        %v1199 = vld [vmem:[%s1169 + $0xac] sm:$0xf]
        %v1200 = vld [vmem:[%s1169 + $0xb4] sm:$0xf]
        %v1201 = vld [vmem:[%s1169 + $0xb8] sm:$0xf]
        %s1202 = scalar_lea.vmem %s1, 16
        %v1203 = vld [vmem:[%s1202] sm:$0xf]
        %v1204 = vld [vmem:[%s1202 + $0x4] sm:$0xf]
        %v1237 = vunpack.c.l.b16 %v1170
        %v1238 = vunpack.c.l.b16 %v1171
        %v1239 = vunpack.c.l.b16 %v1172
        %v1240 = vunpack.c.l.b16 %v1173
        %v1241 = vunpack.c.l.b16 %v1174
        %v1242 = vunpack.c.l.b16 %v1175
        %v1243 = vunpack.c.l.b16 %v1176
        %v1244 = vunpack.c.l.b16 %v1177
        %v1245 = vunpack.c.l.b16 %v1178
        %v1246 = vunpack.c.l.b16 %v1179
        %v1247 = vunpack.c.l.b16 %v1180
        %v1248 = vunpack.c.l.b16 %v1181
        %v1249 = vunpack.c.l.b16 %v1182
        %v1250 = vunpack.c.l.b16 %v1183
        %v1251 = vunpack.c.l.b16 %v1184
        %v1252 = vunpack.c.l.b16 %v1185
        %v1253 = vunpack.c.l.b16 %v1186
        %v1254 = vunpack.c.l.b16 %v1187
        %v1255 = vunpack.c.l.b16 %v1188
        %v1256 = vunpack.c.l.b16 %v1189
        %v1257 = vunpack.c.l.b16 %v1190
        %v1258 = vunpack.c.l.b16 %v1191
        %v1259 = vunpack.c.l.b16 %v1192
        %v1260 = vunpack.c.l.b16 %v1193
        %v1261 = vunpack.c.l.b16 %v1194
        %v1262 = vunpack.c.l.b16 %v1195
        %v1263 = vunpack.c.l.b16 %v1196
        %v1264 = vunpack.c.l.b16 %v1197
        %v1265 = vunpack.c.l.b16 %v1198
        %v1266 = vunpack.c.l.b16 %v1199
        %v1267 = vunpack.c.l.b16 %v1200
        %v1268 = vunpack.c.l.b16 %v1201
        %v1269 = vpack.c.b16 %v1238, %v1237
        %v1270 = vpack.c.b16 %v1240, %v1239
        %v1271 = vpack.c.b16 %v1242, %v1241
        %v1272 = vpack.c.b16 %v1244, %v1243
        %v1273 = vpack.c.b16 %v1246, %v1245
        %v1274 = vpack.c.b16 %v1248, %v1247
        %v1275 = vpack.c.b16 %v1250, %v1249
        %v1276 = vpack.c.b16 %v1252, %v1251
        %v1277 = vpack.c.b16 %v1254, %v1253
        %v1278 = vpack.c.b16 %v1256, %v1255
        %v1279 = vpack.c.b16 %v1258, %v1257
        %v1280 = vpack.c.b16 %v1260, %v1259
        %v1281 = vpack.c.b16 %v1262, %v1261
        %v1282 = vpack.c.b16 %v1264, %v1263
        %v1283 = vpack.c.b16 %v1266, %v1265
        %v1284 = vpack.c.b16 %v1268, %v1267
        %v1287 = vunpack.c.l.b16 %v1203
        %v1288 = vunpack.c.l.b16 %v1204
        %v1289 = vpack.c.b16 %v1288, %v1287
        %v1292 = vsel %vm664, %v1269, 0
        %v1295 = vsel %vm664, %v1270, 0
        %v1298 = vsel %vm664, %v1271, 0
        %v1301 = vsel %vm664, %v1272, 0
        %v1304 = vsel %vm664, %v1273, 0
        %v1307 = vsel %vm664, %v1274, 0
        %v1310 = vsel %vm664, %v1275, 0
        %v1313 = vsel %vm664, %v1276, 0
        %v1316 = vsel %vm664, %v1277, 0
        %v1319 = vsel %vm664, %v1278, 0
        %v1322 = vsel %vm664, %v1279, 0
        %v1325 = vsel %vm664, %v1280, 0
        %v1328 = vsel %vm664, %v1281, 0
        %v1331 = vsel %vm664, %v1282, 0
        %v1334 = vsel %vm664, %v1283, 0
        %v1337 = vsel %vm664, %v1284, 0
        %1339 = vmatprep.subr.bf16.mxu0 0
        %1340 = vmatpush1.bf16.msra.mxu0 0
        %1341 = vmatprep.subr.bf16.mxu0 0
        %1342 = vmatpush1.bf16.msra.mxu0 0
        %1343 = vmatprep.subr.bf16.mxu0 0
        %1344 = vmatpush1.bf16.msra.mxu0 0
        %1345 = vmatprep.subr.bf16.mxu0 0
        %1346 = vmatpush1.bf16.msra.mxu0 0
        %1347 = vmatprep.subr.bf16.mxu0 0
        %1348 = vmatpush1.bf16.msra.mxu0 0
        %1349 = vmatprep.subr.bf16.mxu0 0
        %1350 = vmatpush1.bf16.msra.mxu0 0
        %1351 = vmatprep.subr.bf16.mxu0 0
        %1352 = vmatpush1.bf16.msra.mxu0 0
        %1353 = vmatprep.subr.bf16.mxu0 0
        %1354 = vmatpush1.bf16.msra.mxu0 %v1289
        %1355 = vmatprep.subr.bf16.mxu0 0
        %1356 = vmatpush2.bf16.msra.mxu0 0
        %1357 = vmatprep.subr.bf16.mxu0 0
        %1358 = vmatpush2.bf16.msra.mxu0 0
        %1359 = vmatprep.subr.bf16.mxu0 0
        %1360 = vmatpush2.bf16.msra.mxu0 0
        %1361 = vmatprep.subr.bf16.mxu0 0
        %1362 = vmatpush2.bf16.msra.mxu0 0
        %1363 = vmatprep.subr.bf16.mxu0 0
        %1364 = vmatpush2.bf16.msra.mxu0 0
        %1365 = vmatprep.subr.bf16.mxu0 0
        %1366 = vmatpush2.bf16.msra.mxu0 0
        %1367 = vmatprep.subr.bf16.mxu0 0
        %1368 = vmatpush2.bf16.msra.mxu0 0
        %1369 = vmatprep.subr.bf16.mxu0 0
        %1370 = vmatpush2.bf16.msra.mxu0 0
        %1371 = vmatprep.mubr.bf16.mxu0 0
        %1372 = vmatmul.mubr.bf16.gmra.mxu0 %v1292
        %v1373 = vpop.f32.mrf.mxu0
        %v1374 = vadd.f32 0.0, %v1373
        %v1375 = vpop.f32.mrf.mxu0
        %v1376 = vpop.f32.mrf.mxu0
        %v1377 = vadd.f32 0.0, %v1376
        %v1378 = vpop.f32.mrf.mxu0
        %1379 = vmatprep.mubr.bf16.mxu0 0
        %1380 = vmatmul.mubr.bf16.gmra.mxu0 %v1295
        %v1381 = vpop.f32.mrf.mxu0
        %v1382 = vadd.f32 0.0, %v1381
        %v1383 = vpop.f32.mrf.mxu0
        %v1384 = vpop.f32.mrf.mxu0
        %v1385 = vadd.f32 0.0, %v1384
        %v1386 = vpop.f32.mrf.mxu0
        %1387 = vmatprep.mubr.bf16.mxu0 0
        %1388 = vmatmul.mubr.bf16.gmra.mxu0 %v1298
        %v1389 = vpop.f32.mrf.mxu0
        %v1390 = vadd.f32 0.0, %v1389
        %v1391 = vpop.f32.mrf.mxu0
        %v1392 = vpop.f32.mrf.mxu0
        %v1393 = vadd.f32 0.0, %v1392
        %v1394 = vpop.f32.mrf.mxu0
        %1395 = vmatprep.mubr.bf16.mxu0 0
        %1396 = vmatmul.mubr.bf16.gmra.mxu0 %v1301
        %v1397 = vpop.f32.mrf.mxu0
        %v1398 = vadd.f32 0.0, %v1397
        %v1399 = vpop.f32.mrf.mxu0
        %v1400 = vpop.f32.mrf.mxu0
        %v1401 = vadd.f32 0.0, %v1400
        %v1402 = vpop.f32.mrf.mxu0
        %1403 = vmatprep.mubr.bf16.mxu0 0
        %1404 = vmatmul.mubr.bf16.gmra.mxu0 %v1304
        %v1405 = vpop.f32.mrf.mxu0
        %v1406 = vadd.f32 0.0, %v1405
        %v1407 = vpop.f32.mrf.mxu0
        %v1408 = vpop.f32.mrf.mxu0
        %v1409 = vadd.f32 0.0, %v1408
        %v1410 = vpop.f32.mrf.mxu0
        %1411 = vmatprep.mubr.bf16.mxu0 0
        %1412 = vmatmul.mubr.bf16.gmra.mxu0 %v1307
        %v1413 = vpop.f32.mrf.mxu0
        %v1414 = vadd.f32 0.0, %v1413
        %v1415 = vpop.f32.mrf.mxu0
        %v1416 = vpop.f32.mrf.mxu0
        %v1417 = vadd.f32 0.0, %v1416
        %v1418 = vpop.f32.mrf.mxu0
        %1419 = vmatprep.mubr.bf16.mxu0 0
        %1420 = vmatmul.mubr.bf16.gmra.mxu0 %v1310
        %v1421 = vpop.f32.mrf.mxu0
        %v1422 = vadd.f32 0.0, %v1421
        %v1423 = vpop.f32.mrf.mxu0
        %v1424 = vpop.f32.mrf.mxu0
        %v1425 = vadd.f32 0.0, %v1424
        %v1426 = vpop.f32.mrf.mxu0
        %1427 = vmatprep.mubr.bf16.mxu0 0
        %1428 = vmatmul.mubr.bf16.gmra.mxu0 %v1313
        %v1429 = vpop.f32.mrf.mxu0
        %v1430 = vadd.f32 0.0, %v1429
        %v1431 = vpop.f32.mrf.mxu0
        %v1432 = vpop.f32.mrf.mxu0
        %v1433 = vadd.f32 0.0, %v1432
        %v1434 = vpop.f32.mrf.mxu0
        %1435 = vmatprep.mubr.bf16.mxu0 0
        %1436 = vmatmul.mubr.bf16.gmra.mxu0 %v1316
        %v1437 = vpop.f32.mrf.mxu0
        %v1438 = vadd.f32 0.0, %v1437
        %v1439 = vpop.f32.mrf.mxu0
        %v1440 = vpop.f32.mrf.mxu0
        %v1441 = vadd.f32 0.0, %v1440
        %v1442 = vpop.f32.mrf.mxu0
        %1443 = vmatprep.mubr.bf16.mxu0 0
        %1444 = vmatmul.mubr.bf16.gmra.mxu0 %v1319
        %v1445 = vpop.f32.mrf.mxu0
        %v1446 = vadd.f32 0.0, %v1445
        %v1447 = vpop.f32.mrf.mxu0
        %v1448 = vpop.f32.mrf.mxu0
        %v1449 = vadd.f32 0.0, %v1448
        %v1450 = vpop.f32.mrf.mxu0
        %1451 = vmatprep.mubr.bf16.mxu0 0
        %1452 = vmatmul.mubr.bf16.gmra.mxu0 %v1322
        %v1453 = vpop.f32.mrf.mxu0
        %v1454 = vadd.f32 0.0, %v1453
        %v1455 = vpop.f32.mrf.mxu0
        %v1456 = vpop.f32.mrf.mxu0
        %v1457 = vadd.f32 0.0, %v1456
        %v1458 = vpop.f32.mrf.mxu0
        %1459 = vmatprep.mubr.bf16.mxu0 0
        %1460 = vmatmul.mubr.bf16.gmra.mxu0 %v1325
        %v1461 = vpop.f32.mrf.mxu0
        %v1462 = vadd.f32 0.0, %v1461
        %v1463 = vpop.f32.mrf.mxu0
        %v1464 = vpop.f32.mrf.mxu0
        %v1465 = vadd.f32 0.0, %v1464
        %v1466 = vpop.f32.mrf.mxu0
        %1467 = vmatprep.mubr.bf16.mxu0 0
        %1468 = vmatmul.mubr.bf16.gmra.mxu0 %v1328
        %v1469 = vpop.f32.mrf.mxu0
        %v1470 = vadd.f32 0.0, %v1469
        %v1471 = vpop.f32.mrf.mxu0
        %v1472 = vpop.f32.mrf.mxu0
        %v1473 = vadd.f32 0.0, %v1472
        %v1474 = vpop.f32.mrf.mxu0
        %1475 = vmatprep.mubr.bf16.mxu0 0
        %1476 = vmatmul.mubr.bf16.gmra.mxu0 %v1331
        %v1477 = vpop.f32.mrf.mxu0
        %v1478 = vadd.f32 0.0, %v1477
        %v1479 = vpop.f32.mrf.mxu0
        %v1480 = vpop.f32.mrf.mxu0
        %v1481 = vadd.f32 0.0, %v1480
        %v1482 = vpop.f32.mrf.mxu0
        %1483 = vmatprep.mubr.bf16.mxu0 0
        %1484 = vmatmul.mubr.bf16.gmra.mxu0 %v1334
        %v1485 = vpop.f32.mrf.mxu0
        %v1486 = vadd.f32 0.0, %v1485
        %v1487 = vpop.f32.mrf.mxu0
        %v1488 = vpop.f32.mrf.mxu0
        %v1489 = vadd.f32 0.0, %v1488
        %v1490 = vpop.f32.mrf.mxu0
        %1491 = vmatprep.mubr.bf16.mxu0 0
        %1492 = vmatmul.mubr.bf16.gmra.mxu0 %v1337
        %v1493 = vpop.f32.mrf.mxu0
        %v1494 = vadd.f32 0.0, %v1493
        %v1495 = vpop.f32.mrf.mxu0
        %v1496 = vpop.f32.mrf.mxu0
        %v1497 = vadd.f32 0.0, %v1496
        %v1498 = vpop.f32.mrf.mxu0
        %1499 = vdwg.mxu0
        %v1500 = vadd.f32 %v1043, %v1374
        %v1501 = vadd.f32 %v1046, %v1377
        %v1502 = vadd.f32 %v1051, %v1382
        %v1503 = vadd.f32 %v1054, %v1385
        %v1504 = vadd.f32 %v1059, %v1390
        %v1505 = vadd.f32 %v1062, %v1393
        %v1506 = vadd.f32 %v1067, %v1398
        %v1507 = vadd.f32 %v1070, %v1401
        %v1508 = vadd.f32 %v1075, %v1406
        %v1509 = vadd.f32 %v1078, %v1409
        %v1510 = vadd.f32 %v1083, %v1414
        %v1511 = vadd.f32 %v1086, %v1417
        %v1512 = vadd.f32 %v1091, %v1422
        %v1513 = vadd.f32 %v1094, %v1425
        %v1514 = vadd.f32 %v1099, %v1430
        %v1515 = vadd.f32 %v1102, %v1433
        %v1516 = vadd.f32 %v1107, %v1438
        %v1517 = vadd.f32 %v1110, %v1441
        %v1518 = vadd.f32 %v1115, %v1446
        %v1519 = vadd.f32 %v1118, %v1449
        %v1520 = vadd.f32 %v1123, %v1454
        %v1521 = vadd.f32 %v1126, %v1457
        %v1522 = vadd.f32 %v1131, %v1462
        %v1523 = vadd.f32 %v1134, %v1465
        %v1524 = vadd.f32 %v1139, %v1470
        %v1525 = vadd.f32 %v1142, %v1473
        %v1526 = vadd.f32 %v1147, %v1478
        %v1527 = vadd.f32 %v1150, %v1481
        %v1528 = vadd.f32 %v1155, %v1486
        %v1529 = vadd.f32 %v1158, %v1489
        %v1530 = vadd.f32 %v1163, %v1494
        %v1531 = vadd.f32 %v1166, %v1497
        %v1532 = vld [vmem:[%s1169] sm:$0xf]
        %v1533 = vld [vmem:[%s1169 + $0x4] sm:$0xf]
        %v1534 = vld [vmem:[%s1169 + $0x8] sm:$0x1]
        %v1535 = vld [vmem:[%s1169 + $0xc] sm:$0xf]
        %v1536 = vld [vmem:[%s1169 + $0x10] sm:$0xf]
        %v1537 = vld [vmem:[%s1169 + $0x14] sm:$0x1]
        %v1538 = vld [vmem:[%s1169 + $0x18] sm:$0xf]
        %v1539 = vld [vmem:[%s1169 + $0x1c] sm:$0xf]
        %v1540 = vld [vmem:[%s1169 + $0x20] sm:$0x1]
        %v1541 = vld [vmem:[%s1169 + $0x24] sm:$0xf]
        %v1542 = vld [vmem:[%s1169 + $0x28] sm:$0xf]
        %v1543 = vld [vmem:[%s1169 + $0x2c] sm:$0x1]
        %v1544 = vld [vmem:[%s1169 + $0x30] sm:$0xf]
        %v1545 = vld [vmem:[%s1169 + $0x34] sm:$0xf]
        %v1546 = vld [vmem:[%s1169 + $0x38] sm:$0x1]
        %v1547 = vld [vmem:[%s1169 + $0x3c] sm:$0xf]
        %v1548 = vld [vmem:[%s1169 + $0x40] sm:$0xf]
        %v1549 = vld [vmem:[%s1169 + $0x44] sm:$0x1]
        %v1550 = vld [vmem:[%s1169 + $0x48] sm:$0xf]
        %v1551 = vld [vmem:[%s1169 + $0x4c] sm:$0xf]
        %v1552 = vld [vmem:[%s1169 + $0x50] sm:$0x1]
        %v1553 = vld [vmem:[%s1169 + $0x54] sm:$0xf]
        %v1554 = vld [vmem:[%s1169 + $0x58] sm:$0xf]
        %v1555 = vld [vmem:[%s1169 + $0x5c] sm:$0x1]
        %v1556 = vld [vmem:[%s1169 + $0x60] sm:$0xf]
        %v1557 = vld [vmem:[%s1169 + $0x64] sm:$0xf]
        %v1558 = vld [vmem:[%s1169 + $0x68] sm:$0x1]
        %v1559 = vld [vmem:[%s1169 + $0x6c] sm:$0xf]
        %v1560 = vld [vmem:[%s1169 + $0x70] sm:$0xf]
        %v1561 = vld [vmem:[%s1169 + $0x74] sm:$0x1]
        %v1562 = vld [vmem:[%s1169 + $0x78] sm:$0xf]
        %v1563 = vld [vmem:[%s1169 + $0x7c] sm:$0xf]
        %v1564 = vld [vmem:[%s1169 + $0x80] sm:$0x1]
        %v1565 = vld [vmem:[%s1169 + $0x84] sm:$0xf]
        %v1566 = vld [vmem:[%s1169 + $0x88] sm:$0xf]
        %v1567 = vld [vmem:[%s1169 + $0x8c] sm:$0x1]
        %v1568 = vld [vmem:[%s1169 + $0x90] sm:$0xf]
        %v1569 = vld [vmem:[%s1169 + $0x94] sm:$0xf]
        %v1570 = vld [vmem:[%s1169 + $0x98] sm:$0x1]
        %v1571 = vld [vmem:[%s1169 + $0x9c] sm:$0xf]
        %v1572 = vld [vmem:[%s1169 + $0xa0] sm:$0xf]
        %v1573 = vld [vmem:[%s1169 + $0xa4] sm:$0x1]
        %v1574 = vld [vmem:[%s1169 + $0xa8] sm:$0xf]
        %v1575 = vld [vmem:[%s1169 + $0xac] sm:$0xf]
        %v1576 = vld [vmem:[%s1169 + $0xb0] sm:$0x1]
        %v1577 = vld [vmem:[%s1169 + $0xb4] sm:$0xf]
        %v1578 = vld [vmem:[%s1169 + $0xb8] sm:$0xf]
        %v1579 = vld [vmem:[%s1169 + $0xbc] sm:$0x1]
        %v1581 = vshrl.u32 %v1532, 16
        %v1583 = vrot.slane %v1581, 4
        %v1584 = vshll.u32 %v1532, 16
        %v1586 = vrot.slane %v1584, 5
        %v1587 = vor.u32 %v1583, %v1586
        %v1588 = vrot.slane %v1587, 4
        %v1590 = vshll.u32 %v1533, 16
        %v1592 = vrot.slane %v1590, 5
        %v1593 = vsel %vm222, %v1588, %v1592
        %v1594 = vshrl.u32 %v1533, 16
        %v1596 = vrot.slane %v1594, 4
        %v1597 = vor.u32 %v1596, %v1592
        %v1598 = vrot.slane %v1597, 4
        %v1600 = vshll.u32 %v1534, 16
        %v1602 = vrot.slane %v1600, 5
        %v1603 = vsel %vm222, %v1598, %v1602
        %v1605 = vshrl.u32 %v1535, 16
        %v1607 = vrot.slane %v1605, 4
        %v1608 = vshll.u32 %v1535, 16
        %v1610 = vrot.slane %v1608, 5
        %v1611 = vor.u32 %v1607, %v1610
        %v1612 = vrot.slane %v1611, 4
        %v1614 = vshll.u32 %v1536, 16
        %v1616 = vrot.slane %v1614, 5
        %v1617 = vsel %vm222, %v1612, %v1616
        %v1618 = vshrl.u32 %v1536, 16
        %v1620 = vrot.slane %v1618, 4
        %v1621 = vor.u32 %v1620, %v1616
        %v1622 = vrot.slane %v1621, 4
        %v1624 = vshll.u32 %v1537, 16
        %v1626 = vrot.slane %v1624, 5
        %v1627 = vsel %vm222, %v1622, %v1626
        %v1629 = vshrl.u32 %v1538, 16
        %v1631 = vrot.slane %v1629, 4
        %v1632 = vshll.u32 %v1538, 16
        %v1634 = vrot.slane %v1632, 5
        %v1635 = vor.u32 %v1631, %v1634
        %v1636 = vrot.slane %v1635, 4
        %v1638 = vshll.u32 %v1539, 16
        %v1640 = vrot.slane %v1638, 5
        %v1641 = vsel %vm222, %v1636, %v1640
        %v1642 = vshrl.u32 %v1539, 16
        %v1644 = vrot.slane %v1642, 4
        %v1645 = vor.u32 %v1644, %v1640
        %v1646 = vrot.slane %v1645, 4
        %v1648 = vshll.u32 %v1540, 16
        %v1650 = vrot.slane %v1648, 5
        %v1651 = vsel %vm222, %v1646, %v1650
        %v1653 = vshrl.u32 %v1541, 16
        %v1655 = vrot.slane %v1653, 4
        %v1656 = vshll.u32 %v1541, 16
        %v1658 = vrot.slane %v1656, 5
        %v1659 = vor.u32 %v1655, %v1658
        %v1660 = vrot.slane %v1659, 4
        %v1662 = vshll.u32 %v1542, 16
        %v1664 = vrot.slane %v1662, 5
        %v1665 = vsel %vm222, %v1660, %v1664
        %v1666 = vshrl.u32 %v1542, 16
        %v1668 = vrot.slane %v1666, 4
        %v1669 = vor.u32 %v1668, %v1664
        %v1670 = vrot.slane %v1669, 4
        %v1672 = vshll.u32 %v1543, 16
        %v1674 = vrot.slane %v1672, 5
        %v1675 = vsel %vm222, %v1670, %v1674
        %v1677 = vshrl.u32 %v1544, 16
        %v1679 = vrot.slane %v1677, 4
        %v1680 = vshll.u32 %v1544, 16
        %v1682 = vrot.slane %v1680, 5
        %v1683 = vor.u32 %v1679, %v1682
        %v1684 = vrot.slane %v1683, 4
        %v1686 = vshll.u32 %v1545, 16
        %v1688 = vrot.slane %v1686, 5
        %v1689 = vsel %vm222, %v1684, %v1688
        %v1690 = vshrl.u32 %v1545, 16
        %v1692 = vrot.slane %v1690, 4
        %v1693 = vor.u32 %v1692, %v1688
        %v1694 = vrot.slane %v1693, 4
        %v1696 = vshll.u32 %v1546, 16
        %v1698 = vrot.slane %v1696, 5
        %v1699 = vsel %vm222, %v1694, %v1698
        %v1701 = vshrl.u32 %v1547, 16
        %v1703 = vrot.slane %v1701, 4
        %v1704 = vshll.u32 %v1547, 16
        %v1706 = vrot.slane %v1704, 5
        %v1707 = vor.u32 %v1703, %v1706
        %v1708 = vrot.slane %v1707, 4
        %v1710 = vshll.u32 %v1548, 16
        %v1712 = vrot.slane %v1710, 5
        %v1713 = vsel %vm222, %v1708, %v1712
        %v1714 = vshrl.u32 %v1548, 16
        %v1716 = vrot.slane %v1714, 4
        %v1717 = vor.u32 %v1716, %v1712
        %v1718 = vrot.slane %v1717, 4
        %v1720 = vshll.u32 %v1549, 16
        %v1722 = vrot.slane %v1720, 5
        %v1723 = vsel %vm222, %v1718, %v1722
        %v1725 = vshrl.u32 %v1550, 16
        %v1727 = vrot.slane %v1725, 4
        %v1728 = vshll.u32 %v1550, 16
        %v1730 = vrot.slane %v1728, 5
        %v1731 = vor.u32 %v1727, %v1730
        %v1732 = vrot.slane %v1731, 4
        %v1734 = vshll.u32 %v1551, 16
        %v1736 = vrot.slane %v1734, 5
        %v1737 = vsel %vm222, %v1732, %v1736
        %v1738 = vshrl.u32 %v1551, 16
        %v1740 = vrot.slane %v1738, 4
        %v1741 = vor.u32 %v1740, %v1736
        %v1742 = vrot.slane %v1741, 4
        %v1744 = vshll.u32 %v1552, 16
        %v1746 = vrot.slane %v1744, 5
        %v1747 = vsel %vm222, %v1742, %v1746
        %v1749 = vshrl.u32 %v1553, 16
        %v1751 = vrot.slane %v1749, 4
        %v1752 = vshll.u32 %v1553, 16
        %v1754 = vrot.slane %v1752, 5
        %v1755 = vor.u32 %v1751, %v1754
        %v1756 = vrot.slane %v1755, 4
        %v1758 = vshll.u32 %v1554, 16
        %v1760 = vrot.slane %v1758, 5
        %v1761 = vsel %vm222, %v1756, %v1760
        %v1762 = vshrl.u32 %v1554, 16
        %v1764 = vrot.slane %v1762, 4
        %v1765 = vor.u32 %v1764, %v1760
        %v1766 = vrot.slane %v1765, 4
        %v1768 = vshll.u32 %v1555, 16
        %v1770 = vrot.slane %v1768, 5
        %v1771 = vsel %vm222, %v1766, %v1770
        %v1773 = vshrl.u32 %v1556, 16
        %v1775 = vrot.slane %v1773, 4
        %v1776 = vshll.u32 %v1556, 16
        %v1778 = vrot.slane %v1776, 5
        %v1779 = vor.u32 %v1775, %v1778
        %v1780 = vrot.slane %v1779, 4
        %v1782 = vshll.u32 %v1557, 16
        %v1784 = vrot.slane %v1782, 5
        %v1785 = vsel %vm222, %v1780, %v1784
        %v1786 = vshrl.u32 %v1557, 16
        %v1788 = vrot.slane %v1786, 4
        %v1789 = vor.u32 %v1788, %v1784
        %v1790 = vrot.slane %v1789, 4
        %v1792 = vshll.u32 %v1558, 16
        %v1794 = vrot.slane %v1792, 5
        %v1795 = vsel %vm222, %v1790, %v1794
        %v1797 = vshrl.u32 %v1559, 16
        %v1799 = vrot.slane %v1797, 4
        %v1800 = vshll.u32 %v1559, 16
        %v1802 = vrot.slane %v1800, 5
        %v1803 = vor.u32 %v1799, %v1802
        %v1804 = vrot.slane %v1803, 4
        %v1806 = vshll.u32 %v1560, 16
        %v1808 = vrot.slane %v1806, 5
        %v1809 = vsel %vm222, %v1804, %v1808
        %v1810 = vshrl.u32 %v1560, 16
        %v1812 = vrot.slane %v1810, 4
        %v1813 = vor.u32 %v1812, %v1808
        %v1814 = vrot.slane %v1813, 4
        %v1816 = vshll.u32 %v1561, 16
        %v1818 = vrot.slane %v1816, 5
        %v1819 = vsel %vm222, %v1814, %v1818
        %v1821 = vshrl.u32 %v1562, 16
        %v1823 = vrot.slane %v1821, 4
        %v1824 = vshll.u32 %v1562, 16
        %v1826 = vrot.slane %v1824, 5
        %v1827 = vor.u32 %v1823, %v1826
        %v1828 = vrot.slane %v1827, 4
        %v1830 = vshll.u32 %v1563, 16
        %v1832 = vrot.slane %v1830, 5
        %v1833 = vsel %vm222, %v1828, %v1832
        %v1834 = vshrl.u32 %v1563, 16
        %v1836 = vrot.slane %v1834, 4
        %v1837 = vor.u32 %v1836, %v1832
        %v1838 = vrot.slane %v1837, 4
        %v1840 = vshll.u32 %v1564, 16
        %v1842 = vrot.slane %v1840, 5
        %v1843 = vsel %vm222, %v1838, %v1842
        %v1845 = vshrl.u32 %v1565, 16
        %v1847 = vrot.slane %v1845, 4
        %v1848 = vshll.u32 %v1565, 16
        %v1850 = vrot.slane %v1848, 5
        %v1851 = vor.u32 %v1847, %v1850
        %v1852 = vrot.slane %v1851, 4
        %v1854 = vshll.u32 %v1566, 16
        %v1856 = vrot.slane %v1854, 5
        %v1857 = vsel %vm222, %v1852, %v1856
        %v1858 = vshrl.u32 %v1566, 16
        %v1860 = vrot.slane %v1858, 4
        %v1861 = vor.u32 %v1860, %v1856
        %v1862 = vrot.slane %v1861, 4
        %v1864 = vshll.u32 %v1567, 16
        %v1866 = vrot.slane %v1864, 5
        %v1867 = vsel %vm222, %v1862, %v1866
        %v1869 = vshrl.u32 %v1568, 16
        %v1871 = vrot.slane %v1869, 4
        %v1872 = vshll.u32 %v1568, 16
        %v1874 = vrot.slane %v1872, 5
        %v1875 = vor.u32 %v1871, %v1874
        %v1876 = vrot.slane %v1875, 4
        %v1878 = vshll.u32 %v1569, 16
        %v1880 = vrot.slane %v1878, 5
        %v1881 = vsel %vm222, %v1876, %v1880
        %v1882 = vshrl.u32 %v1569, 16
        %v1884 = vrot.slane %v1882, 4
        %v1885 = vor.u32 %v1884, %v1880
        %v1886 = vrot.slane %v1885, 4
        %v1888 = vshll.u32 %v1570, 16
        %v1890 = vrot.slane %v1888, 5
        %v1891 = vsel %vm222, %v1886, %v1890
        %v1893 = vshrl.u32 %v1571, 16
        %v1895 = vrot.slane %v1893, 4
        %v1896 = vshll.u32 %v1571, 16
        %v1898 = vrot.slane %v1896, 5
        %v1899 = vor.u32 %v1895, %v1898
        %v1900 = vrot.slane %v1899, 4
        %v1902 = vshll.u32 %v1572, 16
        %v1904 = vrot.slane %v1902, 5
        %v1905 = vsel %vm222, %v1900, %v1904
        %v1906 = vshrl.u32 %v1572, 16
        %v1908 = vrot.slane %v1906, 4
        %v1909 = vor.u32 %v1908, %v1904
        %v1910 = vrot.slane %v1909, 4
        %v1912 = vshll.u32 %v1573, 16
        %v1914 = vrot.slane %v1912, 5
        %v1915 = vsel %vm222, %v1910, %v1914
        %v1917 = vshrl.u32 %v1574, 16
        %v1919 = vrot.slane %v1917, 4
        %v1920 = vshll.u32 %v1574, 16
        %v1922 = vrot.slane %v1920, 5
        %v1923 = vor.u32 %v1919, %v1922
        %v1924 = vrot.slane %v1923, 4
        %v1926 = vshll.u32 %v1575, 16
        %v1928 = vrot.slane %v1926, 5
        %v1929 = vsel %vm222, %v1924, %v1928
        %v1930 = vshrl.u32 %v1575, 16
        %v1932 = vrot.slane %v1930, 4
        %v1933 = vor.u32 %v1932, %v1928
        %v1934 = vrot.slane %v1933, 4
        %v1936 = vshll.u32 %v1576, 16
        %v1938 = vrot.slane %v1936, 5
        %v1939 = vsel %vm222, %v1934, %v1938
        %v1941 = vshrl.u32 %v1577, 16
        %v1943 = vrot.slane %v1941, 4
        %v1944 = vshll.u32 %v1577, 16
        %v1946 = vrot.slane %v1944, 5
        %v1947 = vor.u32 %v1943, %v1946
        %v1948 = vrot.slane %v1947, 4
        %v1950 = vshll.u32 %v1578, 16
        %v1952 = vrot.slane %v1950, 5
        %v1953 = vsel %vm222, %v1948, %v1952
        %v1954 = vshrl.u32 %v1578, 16
        %v1956 = vrot.slane %v1954, 4
        %v1957 = vor.u32 %v1956, %v1952
        %v1958 = vrot.slane %v1957, 4
        %v1960 = vshll.u32 %v1579, 16
        %v1962 = vrot.slane %v1960, 5
        %v1963 = vsel %vm222, %v1958, %v1962
        %s1964 = scalar_lea.vmem %s1, 24
        %v1965 = vld [vmem:[%s1964] sm:$0xf]
        %v1966 = vld [vmem:[%s1964 + $0x4] sm:$0xf]
        %v1967 = vunpack.c.l.b16 %v1593
        %v1968 = vunpack.c.l.b16 %v1603
        %v1969 = vunpack.c.l.b16 %v1617
        %v1970 = vunpack.c.l.b16 %v1627
        %v1971 = vunpack.c.l.b16 %v1641
        %v1972 = vunpack.c.l.b16 %v1651
        %v1973 = vunpack.c.l.b16 %v1665
        %v1974 = vunpack.c.l.b16 %v1675
        %v1975 = vunpack.c.l.b16 %v1689
        %v1976 = vunpack.c.l.b16 %v1699
        %v1977 = vunpack.c.l.b16 %v1713
        %v1978 = vunpack.c.l.b16 %v1723
        %v1979 = vunpack.c.l.b16 %v1737
        %v1980 = vunpack.c.l.b16 %v1747
        %v1981 = vunpack.c.l.b16 %v1761
        %v1982 = vunpack.c.l.b16 %v1771
        %v1983 = vunpack.c.l.b16 %v1785
        %v1984 = vunpack.c.l.b16 %v1795
        %v1985 = vunpack.c.l.b16 %v1809
        %v1986 = vunpack.c.l.b16 %v1819
        %v1987 = vunpack.c.l.b16 %v1833
        %v1988 = vunpack.c.l.b16 %v1843
        %v1989 = vunpack.c.l.b16 %v1857
        %v1990 = vunpack.c.l.b16 %v1867
        %v1991 = vunpack.c.l.b16 %v1881
        %v1992 = vunpack.c.l.b16 %v1891
        %v1993 = vunpack.c.l.b16 %v1905
        %v1994 = vunpack.c.l.b16 %v1915
        %v1995 = vunpack.c.l.b16 %v1929
        %v1996 = vunpack.c.l.b16 %v1939
        %v1997 = vunpack.c.l.b16 %v1953
        %v1998 = vunpack.c.l.b16 %v1963
        %v1999 = vpack.c.b16 %v1968, %v1967
        %v2000 = vpack.c.b16 %v1970, %v1969
        %v2001 = vpack.c.b16 %v1972, %v1971
        %v2002 = vpack.c.b16 %v1974, %v1973
        %v2003 = vpack.c.b16 %v1976, %v1975
        %v2004 = vpack.c.b16 %v1978, %v1977
        %v2005 = vpack.c.b16 %v1980, %v1979
        %v2006 = vpack.c.b16 %v1982, %v1981
        %v2007 = vpack.c.b16 %v1984, %v1983
        %v2008 = vpack.c.b16 %v1986, %v1985
        %v2009 = vpack.c.b16 %v1988, %v1987
        %v2010 = vpack.c.b16 %v1990, %v1989
        %v2011 = vpack.c.b16 %v1992, %v1991
        %v2012 = vpack.c.b16 %v1994, %v1993
        %v2013 = vpack.c.b16 %v1996, %v1995
        %v2014 = vpack.c.b16 %v1998, %v1997
        %v2017 = vunpack.c.l.b16 %v1965
        %v2018 = vunpack.c.l.b16 %v1966
        %v2019 = vpack.c.b16 %v2018, %v2017
        %v2022 = vsel %vm664, %v1999, 0
        %v2025 = vsel %vm664, %v2000, 0
        %v2028 = vsel %vm664, %v2001, 0
        %v2031 = vsel %vm664, %v2002, 0
        %v2034 = vsel %vm664, %v2003, 0
        %v2037 = vsel %vm664, %v2004, 0
        %v2040 = vsel %vm664, %v2005, 0
        %v2043 = vsel %vm664, %v2006, 0
        %v2046 = vsel %vm664, %v2007, 0
        %v2049 = vsel %vm664, %v2008, 0
        %v2052 = vsel %vm664, %v2009, 0
        %v2055 = vsel %vm664, %v2010, 0
        %v2058 = vsel %vm664, %v2011, 0
        %v2061 = vsel %vm664, %v2012, 0
        %v2064 = vsel %vm664, %v2013, 0
        %v2067 = vsel %vm664, %v2014, 0
        %2069 = vmatprep.subr.bf16.mxu0 0
        %2070 = vmatpush1.bf16.msra.mxu0 0
        %2071 = vmatprep.subr.bf16.mxu0 0
        %2072 = vmatpush1.bf16.msra.mxu0 0
        %2073 = vmatprep.subr.bf16.mxu0 0
        %2074 = vmatpush1.bf16.msra.mxu0 0
        %2075 = vmatprep.subr.bf16.mxu0 0
        %2076 = vmatpush1.bf16.msra.mxu0 0
        %2077 = vmatprep.subr.bf16.mxu0 0
        %2078 = vmatpush1.bf16.msra.mxu0 0
        %2079 = vmatprep.subr.bf16.mxu0 0
        %2080 = vmatpush1.bf16.msra.mxu0 0
        %2081 = vmatprep.subr.bf16.mxu0 0
        %2082 = vmatpush1.bf16.msra.mxu0 0
        %2083 = vmatprep.subr.bf16.mxu0 0
        %2084 = vmatpush1.bf16.msra.mxu0 %v2019
        %2085 = vmatprep.subr.bf16.mxu0 0
        %2086 = vmatpush2.bf16.msra.mxu0 0
        %2087 = vmatprep.subr.bf16.mxu0 0
        %2088 = vmatpush2.bf16.msra.mxu0 0
        %2089 = vmatprep.subr.bf16.mxu0 0
        %2090 = vmatpush2.bf16.msra.mxu0 0
        %2091 = vmatprep.subr.bf16.mxu0 0
        %2092 = vmatpush2.bf16.msra.mxu0 0
        %2093 = vmatprep.subr.bf16.mxu0 0
        %2094 = vmatpush2.bf16.msra.mxu0 0
        %2095 = vmatprep.subr.bf16.mxu0 0
        %2096 = vmatpush2.bf16.msra.mxu0 0
        %2097 = vmatprep.subr.bf16.mxu0 0
        %2098 = vmatpush2.bf16.msra.mxu0 0
        %2099 = vmatprep.subr.bf16.mxu0 0
        %2100 = vmatpush2.bf16.msra.mxu0 0
        %2101 = vmatprep.mubr.bf16.mxu0 0
        %2102 = vmatmul.mubr.bf16.gmra.mxu0 %v2022
        %v2103 = vpop.f32.mrf.mxu0
        %v2104 = vadd.f32 0.0, %v2103
        %v2105 = vpop.f32.mrf.mxu0
        %v2106 = vpop.f32.mrf.mxu0
        %v2107 = vadd.f32 0.0, %v2106
        %v2108 = vpop.f32.mrf.mxu0
        %2109 = vmatprep.mubr.bf16.mxu0 0
        %2110 = vmatmul.mubr.bf16.gmra.mxu0 %v2025
        %v2111 = vpop.f32.mrf.mxu0
        %v2112 = vadd.f32 0.0, %v2111
        %v2113 = vpop.f32.mrf.mxu0
        %v2114 = vpop.f32.mrf.mxu0
        %v2115 = vadd.f32 0.0, %v2114
        %v2116 = vpop.f32.mrf.mxu0
        %2117 = vmatprep.mubr.bf16.mxu0 0
        %2118 = vmatmul.mubr.bf16.gmra.mxu0 %v2028
        %v2119 = vpop.f32.mrf.mxu0
        %v2120 = vadd.f32 0.0, %v2119
        %v2121 = vpop.f32.mrf.mxu0
        %v2122 = vpop.f32.mrf.mxu0
        %v2123 = vadd.f32 0.0, %v2122
        %v2124 = vpop.f32.mrf.mxu0
        %2125 = vmatprep.mubr.bf16.mxu0 0
        %2126 = vmatmul.mubr.bf16.gmra.mxu0 %v2031
        %v2127 = vpop.f32.mrf.mxu0
        %v2128 = vadd.f32 0.0, %v2127
        %v2129 = vpop.f32.mrf.mxu0
        %v2130 = vpop.f32.mrf.mxu0
        %v2131 = vadd.f32 0.0, %v2130
        %v2132 = vpop.f32.mrf.mxu0
        %2133 = vmatprep.mubr.bf16.mxu0 0
        %2134 = vmatmul.mubr.bf16.gmra.mxu0 %v2034
        %v2135 = vpop.f32.mrf.mxu0
        %v2136 = vadd.f32 0.0, %v2135
        %v2137 = vpop.f32.mrf.mxu0
        %v2138 = vpop.f32.mrf.mxu0
        %v2139 = vadd.f32 0.0, %v2138
        %v2140 = vpop.f32.mrf.mxu0
        %2141 = vmatprep.mubr.bf16.mxu0 0
        %2142 = vmatmul.mubr.bf16.gmra.mxu0 %v2037
        %v2143 = vpop.f32.mrf.mxu0
        %v2144 = vadd.f32 0.0, %v2143
        %v2145 = vpop.f32.mrf.mxu0
        %v2146 = vpop.f32.mrf.mxu0
        %v2147 = vadd.f32 0.0, %v2146
        %v2148 = vpop.f32.mrf.mxu0
        %2149 = vmatprep.mubr.bf16.mxu0 0
        %2150 = vmatmul.mubr.bf16.gmra.mxu0 %v2040
        %v2151 = vpop.f32.mrf.mxu0
        %v2152 = vadd.f32 0.0, %v2151
        %v2153 = vpop.f32.mrf.mxu0
        %v2154 = vpop.f32.mrf.mxu0
        %v2155 = vadd.f32 0.0, %v2154
        %v2156 = vpop.f32.mrf.mxu0
        %2157 = vmatprep.mubr.bf16.mxu0 0
        %2158 = vmatmul.mubr.bf16.gmra.mxu0 %v2043
        %v2159 = vpop.f32.mrf.mxu0
        %v2160 = vadd.f32 0.0, %v2159
        %v2161 = vpop.f32.mrf.mxu0
        %v2162 = vpop.f32.mrf.mxu0
        %v2163 = vadd.f32 0.0, %v2162
        %v2164 = vpop.f32.mrf.mxu0
        %2165 = vmatprep.mubr.bf16.mxu0 0
        %2166 = vmatmul.mubr.bf16.gmra.mxu0 %v2046
        %v2167 = vpop.f32.mrf.mxu0
        %v2168 = vadd.f32 0.0, %v2167
        %v2169 = vpop.f32.mrf.mxu0
        %v2170 = vpop.f32.mrf.mxu0
        %v2171 = vadd.f32 0.0, %v2170
        %v2172 = vpop.f32.mrf.mxu0
        %2173 = vmatprep.mubr.bf16.mxu0 0
        %2174 = vmatmul.mubr.bf16.gmra.mxu0 %v2049
        %v2175 = vpop.f32.mrf.mxu0
        %v2176 = vadd.f32 0.0, %v2175
        %v2177 = vpop.f32.mrf.mxu0
        %v2178 = vpop.f32.mrf.mxu0
        %v2179 = vadd.f32 0.0, %v2178
        %v2180 = vpop.f32.mrf.mxu0
        %2181 = vmatprep.mubr.bf16.mxu0 0
        %2182 = vmatmul.mubr.bf16.gmra.mxu0 %v2052
        %v2183 = vpop.f32.mrf.mxu0
        %v2184 = vadd.f32 0.0, %v2183
        %v2185 = vpop.f32.mrf.mxu0
        %v2186 = vpop.f32.mrf.mxu0
        %v2187 = vadd.f32 0.0, %v2186
        %v2188 = vpop.f32.mrf.mxu0
        %2189 = vmatprep.mubr.bf16.mxu0 0
        %2190 = vmatmul.mubr.bf16.gmra.mxu0 %v2055
        %v2191 = vpop.f32.mrf.mxu0
        %v2192 = vadd.f32 0.0, %v2191
        %v2193 = vpop.f32.mrf.mxu0
        %v2194 = vpop.f32.mrf.mxu0
        %v2195 = vadd.f32 0.0, %v2194
        %v2196 = vpop.f32.mrf.mxu0
        %2197 = vmatprep.mubr.bf16.mxu0 0
        %2198 = vmatmul.mubr.bf16.gmra.mxu0 %v2058
        %v2199 = vpop.f32.mrf.mxu0
        %v2200 = vadd.f32 0.0, %v2199
        %v2201 = vpop.f32.mrf.mxu0
        %v2202 = vpop.f32.mrf.mxu0
        %v2203 = vadd.f32 0.0, %v2202
        %v2204 = vpop.f32.mrf.mxu0
        %2205 = vmatprep.mubr.bf16.mxu0 0
        %2206 = vmatmul.mubr.bf16.gmra.mxu0 %v2061
        %v2207 = vpop.f32.mrf.mxu0
        %v2208 = vadd.f32 0.0, %v2207
        %v2209 = vpop.f32.mrf.mxu0
        %v2210 = vpop.f32.mrf.mxu0
        %v2211 = vadd.f32 0.0, %v2210
        %v2212 = vpop.f32.mrf.mxu0
        %2213 = vmatprep.mubr.bf16.mxu0 0
        %2214 = vmatmul.mubr.bf16.gmra.mxu0 %v2064
        %v2215 = vpop.f32.mrf.mxu0
        %v2216 = vadd.f32 0.0, %v2215
        %v2217 = vpop.f32.mrf.mxu0
        %v2218 = vpop.f32.mrf.mxu0
        %v2219 = vadd.f32 0.0, %v2218
        %v2220 = vpop.f32.mrf.mxu0
        %2221 = vmatprep.mubr.bf16.mxu0 0
        %2222 = vmatmul.mubr.bf16.gmra.mxu0 %v2067
        %v2223 = vpop.f32.mrf.mxu0
        %v2224 = vadd.f32 0.0, %v2223
        %v2225 = vpop.f32.mrf.mxu0
        %v2226 = vpop.f32.mrf.mxu0
        %v2227 = vadd.f32 0.0, %v2226
        %v2228 = vpop.f32.mrf.mxu0
        %2229 = vdwg.mxu0
        %v2230 = vadd.f32 %v1500, %v2104
        %v2231 = vadd.f32 %v1501, %v2107
        %v2232 = vadd.f32 %v1502, %v2112
        %v2233 = vadd.f32 %v1503, %v2115
        %v2234 = vadd.f32 %v1504, %v2120
        %v2235 = vadd.f32 %v1505, %v2123
        %v2236 = vadd.f32 %v1506, %v2128
        %v2237 = vadd.f32 %v1507, %v2131
        %v2238 = vadd.f32 %v1508, %v2136
        %v2239 = vadd.f32 %v1509, %v2139
        %v2240 = vadd.f32 %v1510, %v2144
        %v2241 = vadd.f32 %v1511, %v2147
        %v2242 = vadd.f32 %v1512, %v2152
        %v2243 = vadd.f32 %v1513, %v2155
        %v2244 = vadd.f32 %v1514, %v2160
        %v2245 = vadd.f32 %v1515, %v2163
        %v2246 = vadd.f32 %v1516, %v2168
        %v2247 = vadd.f32 %v1517, %v2171
        %v2248 = vadd.f32 %v1518, %v2176
        %v2249 = vadd.f32 %v1519, %v2179
        %v2250 = vadd.f32 %v1520, %v2184
        %v2251 = vadd.f32 %v1521, %v2187
        %v2252 = vadd.f32 %v1522, %v2192
        %v2253 = vadd.f32 %v1523, %v2195
        %v2254 = vadd.f32 %v1524, %v2200
        %v2255 = vadd.f32 %v1525, %v2203
        %v2256 = vadd.f32 %v1526, %v2208
        %v2257 = vadd.f32 %v1527, %v2211
        %v2258 = vadd.f32 %v1528, %v2216
        %v2259 = vadd.f32 %v1529, %v2219
        %v2260 = vadd.f32 %v1530, %v2224
        %v2261 = vadd.f32 %v1531, %v2227
        %v2262 = vld [vmem:[%s2] sm:$0x1]
        %v2264 = vlaneseq
        %v2265 = vshrl.u32 %v2264, 7
        %v2266 = vsub.s32 0, %v2265
        %v2267 = vrot.slane %v2262, %v2266
        %v2269 = vadd.f32 %v2230, %v2267
        %v2270 = vadd.f32 %v2231, %v2267
        %v2271 = vadd.f32 %v2232, %v2267
        %v2272 = vadd.f32 %v2233, %v2267
        %v2273 = vadd.f32 %v2234, %v2267
        %v2274 = vadd.f32 %v2235, %v2267
        %v2275 = vadd.f32 %v2236, %v2267
        %v2276 = vadd.f32 %v2237, %v2267
        %v2277 = vadd.f32 %v2238, %v2267
        %v2278 = vadd.f32 %v2239, %v2267
        %v2279 = vadd.f32 %v2240, %v2267
        %v2280 = vadd.f32 %v2241, %v2267
        %v2281 = vadd.f32 %v2242, %v2267
        %v2282 = vadd.f32 %v2243, %v2267
        %v2283 = vadd.f32 %v2244, %v2267
        %v2284 = vadd.f32 %v2245, %v2267
        %v2285 = vadd.f32 %v2246, %v2267
        %v2286 = vadd.f32 %v2247, %v2267
        %v2287 = vadd.f32 %v2248, %v2267
        %v2288 = vadd.f32 %v2249, %v2267
        %v2289 = vadd.f32 %v2250, %v2267
        %v2290 = vadd.f32 %v2251, %v2267
        %v2291 = vadd.f32 %v2252, %v2267
        %v2292 = vadd.f32 %v2253, %v2267
        %v2293 = vadd.f32 %v2254, %v2267
        %v2294 = vadd.f32 %v2255, %v2267
        %v2295 = vadd.f32 %v2256, %v2267
        %v2296 = vadd.f32 %v2257, %v2267
        %v2297 = vadd.f32 %v2258, %v2267
        %v2298 = vadd.f32 %v2259, %v2267
        %v2299 = vadd.f32 %v2260, %v2267
        %v2300 = vadd.f32 %v2261, %v2267
        %vm2301 = vcmp.gt.f32.partialorder %v2269, 0.0
        %vm2302 = vcmp.gt.f32.partialorder %v2270, 0.0
        %vm2303 = vcmp.gt.f32.partialorder %v2271, 0.0
        %vm2304 = vcmp.gt.f32.partialorder %v2272, 0.0
        %vm2305 = vcmp.gt.f32.partialorder %v2273, 0.0
        %vm2306 = vcmp.gt.f32.partialorder %v2274, 0.0
        %vm2307 = vcmp.gt.f32.partialorder %v2275, 0.0
        %vm2308 = vcmp.gt.f32.partialorder %v2276, 0.0
        %vm2309 = vcmp.gt.f32.partialorder %v2277, 0.0
        %vm2310 = vcmp.gt.f32.partialorder %v2278, 0.0
        %vm2311 = vcmp.gt.f32.partialorder %v2279, 0.0
        %vm2312 = vcmp.gt.f32.partialorder %v2280, 0.0
        %vm2313 = vcmp.gt.f32.partialorder %v2281, 0.0
        %vm2314 = vcmp.gt.f32.partialorder %v2282, 0.0
        %vm2315 = vcmp.gt.f32.partialorder %v2283, 0.0
        %vm2316 = vcmp.gt.f32.partialorder %v2284, 0.0
        %vm2317 = vcmp.gt.f32.partialorder %v2285, 0.0
        %vm2318 = vcmp.gt.f32.partialorder %v2286, 0.0
        %vm2319 = vcmp.gt.f32.partialorder %v2287, 0.0
        %vm2320 = vcmp.gt.f32.partialorder %v2288, 0.0
        %vm2321 = vcmp.gt.f32.partialorder %v2289, 0.0
        %vm2322 = vcmp.gt.f32.partialorder %v2290, 0.0
        %vm2323 = vcmp.gt.f32.partialorder %v2291, 0.0
        %vm2324 = vcmp.gt.f32.partialorder %v2292, 0.0
        %vm2325 = vcmp.gt.f32.partialorder %v2293, 0.0
        %vm2326 = vcmp.gt.f32.partialorder %v2294, 0.0
        %vm2327 = vcmp.gt.f32.partialorder %v2295, 0.0
        %vm2328 = vcmp.gt.f32.partialorder %v2296, 0.0
        %vm2329 = vcmp.gt.f32.partialorder %v2297, 0.0
        %vm2330 = vcmp.gt.f32.partialorder %v2298, 0.0
        %vm2331 = vcmp.gt.f32.partialorder %v2299, 0.0
        %vm2332 = vcmp.gt.f32.partialorder %v2300, 0.0
        %v2333 = vmul.f32 %v2269, 0.2
        %v2334 = vmul.f32 %v2270, 0.2
        %v2335 = vmul.f32 %v2271, 0.2
        %v2336 = vmul.f32 %v2272, 0.2
        %v2337 = vmul.f32 %v2273, 0.2
        %v2338 = vmul.f32 %v2274, 0.2
        %v2339 = vmul.f32 %v2275, 0.2
        %v2340 = vmul.f32 %v2276, 0.2
        %v2341 = vmul.f32 %v2277, 0.2
        %v2342 = vmul.f32 %v2278, 0.2
        %v2343 = vmul.f32 %v2279, 0.2
        %v2344 = vmul.f32 %v2280, 0.2
        %v2345 = vmul.f32 %v2281, 0.2
        %v2346 = vmul.f32 %v2282, 0.2
        %v2347 = vmul.f32 %v2283, 0.2
        %v2348 = vmul.f32 %v2284, 0.2
        %v2349 = vmul.f32 %v2285, 0.2
        %v2350 = vmul.f32 %v2286, 0.2
        %v2351 = vmul.f32 %v2287, 0.2
        %v2352 = vmul.f32 %v2288, 0.2
        %v2353 = vmul.f32 %v2289, 0.2
        %v2354 = vmul.f32 %v2290, 0.2
        %v2355 = vmul.f32 %v2291, 0.2
        %v2356 = vmul.f32 %v2292, 0.2
        %v2357 = vmul.f32 %v2293, 0.2
        %v2358 = vmul.f32 %v2294, 0.2
        %v2359 = vmul.f32 %v2295, 0.2
        %v2360 = vmul.f32 %v2296, 0.2
        %v2361 = vmul.f32 %v2297, 0.2
        %v2362 = vmul.f32 %v2298, 0.2
        %v2363 = vmul.f32 %v2299, 0.2
        %v2364 = vmul.f32 %v2300, 0.2
        %v2365 = vsel %vm2301, %v2269, %v2333
        %v2366 = vsel %vm2302, %v2270, %v2334
        %v2367 = vsel %vm2303, %v2271, %v2335
        %v2368 = vsel %vm2304, %v2272, %v2336
        %v2369 = vsel %vm2305, %v2273, %v2337
        %v2370 = vsel %vm2306, %v2274, %v2338
        %v2371 = vsel %vm2307, %v2275, %v2339
        %v2372 = vsel %vm2308, %v2276, %v2340
        %v2373 = vsel %vm2309, %v2277, %v2341
        %v2374 = vsel %vm2310, %v2278, %v2342
        %v2375 = vsel %vm2311, %v2279, %v2343
        %v2376 = vsel %vm2312, %v2280, %v2344
        %v2377 = vsel %vm2313, %v2281, %v2345
        %v2378 = vsel %vm2314, %v2282, %v2346
        %v2379 = vsel %vm2315, %v2283, %v2347
        %v2380 = vsel %vm2316, %v2284, %v2348
        %v2381 = vsel %vm2317, %v2285, %v2349
        %v2382 = vsel %vm2318, %v2286, %v2350
        %v2383 = vsel %vm2319, %v2287, %v2351
        %v2384 = vsel %vm2320, %v2288, %v2352
        %v2385 = vsel %vm2321, %v2289, %v2353
        %v2386 = vsel %vm2322, %v2290, %v2354
        %v2387 = vsel %vm2323, %v2291, %v2355
        %v2388 = vsel %vm2324, %v2292, %v2356
        %v2389 = vsel %vm2325, %v2293, %v2357
        %v2390 = vsel %vm2326, %v2294, %v2358
        %v2391 = vsel %vm2327, %v2295, %v2359
        %v2392 = vsel %vm2328, %v2296, %v2360
        %v2393 = vsel %vm2329, %v2297, %v2361
        %v2394 = vsel %vm2330, %v2298, %v2362
        %v2395 = vsel %vm2331, %v2299, %v2363
        %v2396 = vsel %vm2332, %v2300, %v2364
        %v2397 = vpack.c.bf16 %v2366, %v2365
        %v2398 = vpack.c.bf16 %v2368, %v2367
        %v2399 = vpack.c.bf16 %v2370, %v2369
        %v2400 = vpack.c.bf16 %v2372, %v2371
        %v2401 = vpack.c.bf16 %v2374, %v2373
        %v2402 = vpack.c.bf16 %v2376, %v2375
        %v2403 = vpack.c.bf16 %v2378, %v2377
        %v2404 = vpack.c.bf16 %v2380, %v2379
        %v2405 = vpack.c.bf16 %v2382, %v2381
        %v2406 = vpack.c.bf16 %v2384, %v2383
        %v2407 = vpack.c.bf16 %v2386, %v2385
        %v2408 = vpack.c.bf16 %v2388, %v2387
        %v2409 = vpack.c.bf16 %v2390, %v2389
        %v2410 = vpack.c.bf16 %v2392, %v2391
        %v2411 = vpack.c.bf16 %v2394, %v2393
        %v2412 = vpack.c.bf16 %v2396, %v2395
        %v2429 = vunpack.c.l.b16 %v2397
        %v2430 = vunpack.c.h.b16 %v2397
        %v2431 = vunpack.c.l.b16 %v2398
        %v2432 = vunpack.c.h.b16 %v2398
        %v2433 = vunpack.c.l.b16 %v2399
        %v2434 = vunpack.c.h.b16 %v2399
        %v2435 = vunpack.c.l.b16 %v2400
        %v2436 = vunpack.c.h.b16 %v2400
        %v2437 = vunpack.c.l.b16 %v2401
        %v2438 = vunpack.c.h.b16 %v2401
        %v2439 = vunpack.c.l.b16 %v2402
        %v2440 = vunpack.c.h.b16 %v2402
        %v2441 = vunpack.c.l.b16 %v2403
        %v2442 = vunpack.c.h.b16 %v2403
        %v2443 = vunpack.c.l.b16 %v2404
        %v2444 = vunpack.c.h.b16 %v2404
        %v2445 = vunpack.c.l.b16 %v2405
        %v2446 = vunpack.c.h.b16 %v2405
        %v2447 = vunpack.c.l.b16 %v2406
        %v2448 = vunpack.c.h.b16 %v2406
        %v2449 = vunpack.c.l.b16 %v2407
        %v2450 = vunpack.c.h.b16 %v2407
        %v2451 = vunpack.c.l.b16 %v2408
        %v2452 = vunpack.c.h.b16 %v2408
        %v2453 = vunpack.c.l.b16 %v2409
        %v2454 = vunpack.c.h.b16 %v2409
        %v2455 = vunpack.c.l.b16 %v2410
        %v2456 = vunpack.c.h.b16 %v2410
        %v2457 = vunpack.c.l.b16 %v2411
        %v2458 = vunpack.c.h.b16 %v2411
        %v2459 = vunpack.c.l.b16 %v2412
        %v2460 = vunpack.c.h.b16 %v2412
        %v2461 = vpack.c.b16 %v2429, %v2429
        %v2462 = vpack.c.b16 %v2430, %v2430
        %v2463 = vpack.c.b16 %v2431, %v2431
        %v2464 = vpack.c.b16 %v2432, %v2432
        %v2465 = vpack.c.b16 %v2433, %v2433
        %v2466 = vpack.c.b16 %v2434, %v2434
        %v2467 = vpack.c.b16 %v2435, %v2435
        %v2468 = vpack.c.b16 %v2436, %v2436
        %v2469 = vpack.c.b16 %v2437, %v2437
        %v2470 = vpack.c.b16 %v2438, %v2438
        %v2471 = vpack.c.b16 %v2439, %v2439
        %v2472 = vpack.c.b16 %v2440, %v2440
        %v2473 = vpack.c.b16 %v2441, %v2441
        %v2474 = vpack.c.b16 %v2442, %v2442
        %v2475 = vpack.c.b16 %v2443, %v2443
        %v2476 = vpack.c.b16 %v2444, %v2444
        %v2477 = vpack.c.b16 %v2445, %v2445
        %v2478 = vpack.c.b16 %v2446, %v2446
        %v2479 = vpack.c.b16 %v2447, %v2447
        %v2480 = vpack.c.b16 %v2448, %v2448
        %v2481 = vpack.c.b16 %v2449, %v2449
        %v2482 = vpack.c.b16 %v2450, %v2450
        %v2483 = vpack.c.b16 %v2451, %v2451
        %v2484 = vpack.c.b16 %v2452, %v2452
        %v2485 = vpack.c.b16 %v2453, %v2453
        %v2486 = vpack.c.b16 %v2454, %v2454
        %v2487 = vpack.c.b16 %v2455, %v2455
        %v2488 = vpack.c.b16 %v2456, %v2456
        %v2489 = vpack.c.b16 %v2457, %v2457
        %v2490 = vpack.c.b16 %v2458, %v2458
        %v2491 = vpack.c.b16 %v2459, %v2459
        %v2492 = vpack.c.b16 %v2460, %v2460
        %2525 = vst [vmem:[%s163] sm:$0xf] %v2461
        %2526 = vst [vmem:[%s163 + $0x4] sm:$0xf] %v2462
        %2527 = vst [vmem:[%s163 + $0x8] sm:$0xf] %v2463
        %2528 = vst [vmem:[%s163 + $0xc] sm:$0xf] %v2464
        %2529 = vst [vmem:[%s163 + $0x10] sm:$0xf] %v2465
        %2530 = vst [vmem:[%s163 + $0x14] sm:$0xf] %v2466
        %2531 = vst [vmem:[%s163 + $0x18] sm:$0xf] %v2467
        %2532 = vst [vmem:[%s163 + $0x1c] sm:$0xf] %v2468
        %2533 = vst [vmem:[%s163 + $0x20] sm:$0xf] %v2469
        %2534 = vst [vmem:[%s163 + $0x24] sm:$0xf] %v2470
        %2535 = vst [vmem:[%s163 + $0x28] sm:$0xf] %v2471
        %2536 = vst [vmem:[%s163 + $0x2c] sm:$0xf] %v2472
        %2537 = vst [vmem:[%s163 + $0x30] sm:$0xf] %v2473
        %2538 = vst [vmem:[%s163 + $0x34] sm:$0xf] %v2474
        %2539 = vst [vmem:[%s163 + $0x38] sm:$0xf] %v2475
        %2540 = vst [vmem:[%s163 + $0x3c] sm:$0xf] %v2476
        %2541 = vst [vmem:[%s163 + $0x40] sm:$0xf] %v2477
        %2542 = vst [vmem:[%s163 + $0x44] sm:$0xf] %v2478
        %2543 = vst [vmem:[%s163 + $0x48] sm:$0xf] %v2479
        %2544 = vst [vmem:[%s163 + $0x4c] sm:$0xf] %v2480
        %2545 = vst [vmem:[%s163 + $0x50] sm:$0xf] %v2481
        %2546 = vst [vmem:[%s163 + $0x54] sm:$0xf] %v2482
        %2547 = vst [vmem:[%s163 + $0x58] sm:$0xf] %v2483
        %2548 = vst [vmem:[%s163 + $0x5c] sm:$0xf] %v2484
        %2549 = vst [vmem:[%s163 + $0x60] sm:$0xf] %v2485
        %2550 = vst [vmem:[%s163 + $0x64] sm:$0xf] %v2486
        %2551 = vst [vmem:[%s163 + $0x68] sm:$0xf] %v2487
        %2552 = vst [vmem:[%s163 + $0x6c] sm:$0xf] %v2488
        %2553 = vst [vmem:[%s163 + $0x70] sm:$0xf] %v2489
        %2554 = vst [vmem:[%s163 + $0x74] sm:$0xf] %v2490
        %2555 = vst [vmem:[%s163 + $0x78] sm:$0xf] %v2491
        %2556 = vst [vmem:[%s163 + $0x7c] sm:$0xf] %v2492
        %s2557 = sand.u32 %s93, 1
        %s2558 = scalar_lea.sflag [#allocation3], %s2557
        %s2559 = sand.u32 %s93, 1
        %s2560 = smul.addr %s2559, 128
        %s2561 = scalar_lea.vmem [#allocation2], %s2560
        // Predicated region
        $region33: #{tpu_custom_call.1} parent=31 // pred_check
          %p2562 = pneg %p103
        $region34: #{tpu_custom_call.1} parent=31 // pred_check_branch
          %2564 = sbr.rel (%p2562) target = $region36
        $region35: #{tpu_custom_call.1} parent=31 // pred_region
          %s2566 = ssub.s32 2048, 2048
          %2567 = vsyncadd %s2558, %s2566
          %s2568 = smul.addr %s17, 32
          %s2569 = smul.addr %s2568, 64
          %s2570 = scalar_lea.hbm %s3, %s2569
          %s2571 = sshll.u32 %s2561, 4
          %s2572 = int_to_ptr.vmem [resolvable:$true] %s2571
          %2577 = dma.vmem_to_hbm [thread:$0]  %s2572, 2048, %s2570, %s2558, 64, 64, 4
        $region36: #{tpu_custom_call.1} parent=31 // pred_fallthru
          _
      $region32: #{tpu_custom_call.1} parent=5 // pred_fallthru
        _
      %p2578 = scmp.le.s32.totalorder 2, %s12
      // Predicated region
      $region37: #{tpu_custom_call.1} parent=5 // pred_check
        %p2579 = pneg %p2578
      $region38: #{tpu_custom_call.1} parent=5 // pred_check_branch
        %2581 = sbr.rel (%p2579) target = $region40
      $region39: #{tpu_custom_call.1} parent=5 // pred_region
        %s2582 = ssub.s32 %s12, 2
        // Predicated region
        $region41: #{tpu_custom_call.1} parent=39 // pred_check
          %p2583 = pneg %p109
        $region42: #{tpu_custom_call.1} parent=39 // pred_check_branch
          %2585 = sbr.rel (%p2583) target = $region44
        $region43: #{tpu_custom_call.1} parent=39 // pred_region
          %s2586 = sand.u32 %s94, 1
          %s2587 = scalar_lea.sflag [#allocation3], %s2586
          %s2588 = sand.u32 %s94, 1
          %s2589 = smul.addr %s2588, 128
          %s2590 = scalar_lea.vmem [#allocation2], %s2589
          %2591 = dma.done %s2587, 2048
        $region44: #{tpu_custom_call.1} parent=39 // pred_fallthru
          _
      $region40: #{tpu_custom_call.1} parent=5 // pred_fallthru
        _
    $region6: #{tpu_custom_call.1} parent=1 // loop_footer
      %s16 = sadd.s32 1, %s12
    $region7: #{tpu_custom_call.1} parent=1 // loop_footer_branch
      %11 = sbr.rel target = $region3
    $region8: #{tpu_custom_call.1} parent=1 // loop_exit
      _
    %2592 = vsyncpa [#allocation3], 1
    %s2593 = scalar_lea.sflag [#allocation3], 1
    %2594 = vsyncpa %s2593, 1

</llo_original>
